<compile_context>
chip_gen: v7x
topology: tpu7x:2x2x1
jax: 0.10.0
libtpu: 0.0.40
codegen_flags: <defaults>
</compile_context>

<pallas_src>
import functools
import math

import jax
import jax.numpy as jnp
from jax.experimental import pallas as pl
from jax.experimental.pallas import tpu as pltpu


def _round_up(x, m):
    return ((x + m - 1) // m) * m


def _vmem_limit_bytes():
    # ~75% of physical VMEM, capped at 100 MiB.
    #   v7x  (64 MiB/TC)  -> 48 MiB
    #   v5e/v6e (128 MiB) -> 96 MiB
    cap = None
    try:
        cap = getattr(pltpu.get_tpu_info(), "vmem_capacity_bytes", None)
    except Exception:
        cap = None
    if not cap:
        cap = 64 * 1024 * 1024  # conservative fallback (v7x per-TC VMEM)
    return min(int(cap) * 3 // 4, 100 * 1024 * 1024)


_VMEM_LIMIT = _vmem_limit_bytes()


def _choose_tile(n):
    """Largest node tile in {512,256,128} keeping >=2 row tiles (v7x megacore)
    and <=25% padding blow-up of the (quadratic) adjacency."""
    base = _round_up(n, 128)
    for t in (512, 256):
        n_p = _round_up(n, t)
        if n_p <= base * 5 // 4 and n_p // t >= 2:
            return t
    return 128


# --------------- kernel A: sup2 = X @ [W | W_self]  (hoisted) ---------------
def _support_kernel(x_ref, w_ref, o_ref):
    o_ref[...] = jnp.dot(x_ref[...], w_ref[...],
                         preferred_element_type=jnp.float32).astype(o_ref.dtype)


def _compute_support(x, w_cat, *, tile, out_dtype):
    n, f_in = x.shape
    h2 = w_cat.shape[1]
    return pl.pallas_call(
        _support_kernel,
        out_shape=jax.ShapeDtypeStruct((n, h2), out_dtype),
        grid_spec=pltpu.PrefetchScalarGridSpec(
            num_scalar_prefetch=0,
            grid=(n // tile,),
            in_specs=[
                pl.BlockSpec((tile, f_in), lambda i: (i, 0)),  # x row tile
                pl.BlockSpec((f_in, h2), lambda i: (0, 0)),    # fused weight
            ],
            out_specs=pl.BlockSpec((tile, h2), lambda i: (i, 0)),
        ),
        compiler_params=pltpu.CompilerParams(
            dimension_semantics=("parallel",),
            vmem_limit_bytes=_VMEM_LIMIT),
    )(x, w_cat)


# ----------- kernel B: out = relu(BN(adj @ support + self_term)) ------------
def _aggregate_kernel(adj_ref, sup_ref, self_ref, scale_ref, shift_ref,
                      o_ref, acc_ref, *, tk, resident):
    k = pl.program_id(1)

    @pl.when(k == 0)
    def _():
        # Self-loop term (precomputed in kernel A) seeds the f32 accumulator.
        acc_ref[...] = self_ref[...].astype(jnp.float32)

    if resident:
        # Full support matrix resident in VMEM; slice the K tile in-kernel.
        off = pl.multiple_of(k * tk, tk)
        sup = sup_ref[pl.ds(off, tk), :]
    else:
        sup = sup_ref[...]
    acc_ref[...] += jnp.dot(adj_ref[...], sup,
                            preferred_element_type=jnp.float32)

    @pl.when(k == pl.num_programs(1) - 1)
    def _():
        # BatchNorm1d (eval) folded to per-feature scale/shift, then ReLU.
        out = acc_ref[...] * scale_ref[...] + shift_ref[...]
        o_ref[...] = jnp.maximum(out, 0.0).astype(o_ref.dtype)


def gcn_layer(x, adj, w_cat, scale, shift, *, tile, out_dtype):
    """One GraphConvolutionBS layer (withloop=True, withbn=True, bias=False,
    activation=relu, res=False).  x:(n_p,f), adj:(n_p,n_p) already padded and
    cast; w_cat = [W | W_self] padded to (f, 2*h_p); scale/shift:(1, h_p)."""
    n, _ = x.shape
    h2 = w_cat.shape[1]
    h = h2 // 2
    assert adj.shape == (n, n) and n % tile == 0 and h % 128 == 0

    # Hoisted projection: one (n, 2h) slab holds both the adj-support operand
    # and the self-loop term (full 256-lane MXU output when h == 128).
    sup2 = _compute_support(x, w_cat, tile=tile, out_dtype=x.dtype)

    elem = jnp.dtype(x.dtype).itemsize
    vmem_needed = (2 * n * h * elem                        # resident support
                   + 2 * tile * tile * elem                # adj tiles
                   + 2 * tile * h * elem                   # self-term tiles
                   + 2 * tile * h * jnp.dtype(out_dtype).itemsize  # out tiles
                   + tile * h * 4)                         # f32 accumulator
    resident = vmem_needed <= (_VMEM_LIMIT * 7) // 10

    if resident:
        # Constant block index: support fetched from HBM once, never
        # re-streamed per row tile.
        sup_spec = pl.BlockSpec((n, h), lambda i, k: (0, 0))
    else:
        sup_spec = pl.BlockSpec((tile, h), lambda i, k: (k, 0))

    grid = (n // tile, n // tile)  # adj-column reduction is the last grid axis
    return pl.pallas_call(
        functools.partial(_aggregate_kernel, tk=tile, resident=resident),
        out_shape=jax.ShapeDtypeStruct((n, h), out_dtype),
        grid_spec=pltpu.PrefetchScalarGridSpec(
            num_scalar_prefetch=0,
            grid=grid,
            in_specs=[
                pl.BlockSpec((tile, tile), lambda i, k: (i, k)),  # adj tile
                sup_spec,                                         # support (cols [0:h])
                pl.BlockSpec((tile, h), lambda i, k: (i, 1)),     # self term (cols [h:2h])
                pl.BlockSpec((1, h), lambda i, k: (0, 0)),        # bn scale
                pl.BlockSpec((1, h), lambda i, k: (0, 0)),        # bn shift
            ],
            out_specs=pl.BlockSpec((tile, h), lambda i, k: (i, 0)),
            scratch_shapes=[pltpu.VMEM((tile, h), jnp.float32)],
        ),
        compiler_params=pltpu.CompilerParams(
            dimension_semantics=("parallel", "arbitrary"),
            vmem_limit_bytes=_VMEM_LIMIT),
    )(adj, sup2, sup2, scale, shift)


# ----------------- fused residual concat (lane-dense output slab) -----------
def _concat2_kernel(a_ref, b_ref, o_ref, *, fa, fb):
    o_ref[:, 0:fa] = a_ref[...].astype(o_ref.dtype)
    o_ref[:, fa:fa + fb] = b_ref[...].astype(o_ref.dtype)


def fused_concat(a, b, *, tile):
    n, fa = a.shape
    n2, fb = b.shape
    assert n == n2 and n % tile == 0
    out_dtype = jnp.result_type(a.dtype, b.dtype)
    return pl.pallas_call(
        functools.partial(_concat2_kernel, fa=fa, fb=fb),
        out_shape=jax.ShapeDtypeStruct((n, fa + fb), out_dtype),
        grid_spec=pltpu.PrefetchScalarGridSpec(
            num_scalar_prefetch=0,
            grid=(n // tile,),
            in_specs=[
                pl.BlockSpec((tile, fa), lambda i: (i, 0)),
                pl.BlockSpec((tile, fb), lambda i: (i, 0)),
            ],
            out_specs=pl.BlockSpec((tile, fa + fb), lambda i: (i, 0)),
        ),
        compiler_params=pltpu.CompilerParams(
            dimension_semantics=("parallel",),
            vmem_limit_bytes=_VMEM_LIMIT),
    )(a, b)


# ------------------------------- block forward ------------------------------
def _doconcat(x, subx, aggrmethod, tile):
    if x is None:
        return subx
    if aggrmethod == "concat":
        return fused_concat(x, subx, tile=tile)
    if aggrmethod == "add":
        return x + subx
    if aggrmethod == "nores":
        return x
    raise NotImplementedError(aggrmethod)


def _fold_bn(gamma, beta, mean, var, h_p, eps=1e-5):
    h = gamma.shape[0]
    scale = (gamma / jnp.sqrt(var + eps)).astype(jnp.float32)
    shift = (beta - mean * scale).astype(jnp.float32)
    scale_p = jnp.zeros((1, h_p), jnp.float32).at[0, :h].set(scale)
    shift_p = jnp.zeros((1, h_p), jnp.float32).at[0, :h].set(shift)
    return scale_p, shift_p


def _pad_wcat(weight, self_weight, f_pad, h_p, dtype):
    f, h = weight.shape
    w_cat = jnp.zeros((f_pad, 2 * h_p), dtype)
    w_cat = w_cat.at[:f, :h].set(weight.astype(dtype))
    w_cat = w_cat.at[:f, h_p:h_p + h].set(self_weight.astype(dtype))
    return w_cat


def _trim_h(a, h, h_p):
    return a if h == h_p else a[:, :h]


@functools.partial(jax.jit,
                   static_argnames=("aggrmethod", "dense", "tile",
                                    "matmul_dtype"))
def graph_base_block_forward(params_list, x, adj, aggrmethod="concat",
                             dense=False, tile=None,
                             matmul_dtype=jnp.bfloat16):
    """GraphBaseBlock.forward in eval mode (F.dropout is identity)."""
    n, f_in = x.shape
    h = params_list[0]["weight"].shape[1]
    if tile is None:
        tile = _choose_tile(n)
    n_p = _round_up(n, tile)
    h_p = _round_up(h, 128)

    # Pad + cast the dense adjacency exactly ONCE; every layer reuses it.
    # Padded adj rows/cols are zero, so padded nodes never contaminate valid
    # output rows (padded rows do become relu(bn_shift) after a layer -- do
    # NOT reduce over the node axis of padded arrays or use 'add' on them
    # without re-checking; the pad region is sliced off below).
    adj_p = jnp.zeros((n_p, n_p), matmul_dtype).at[:n, :n].set(
        adj.astype(matmul_dtype))
    x_in = jnp.zeros((n_p, f_in), x.dtype).at[:n, :].set(x)

    cur = x_in.astype(matmul_dtype)
    denseout = None
    for li, p in enumerate(params_list):
        pre = x_in if li == 0 else _trim_h(cur, h, h_p)
        denseout = _doconcat(denseout, pre, aggrmethod, tile)
        f_layer = f_in if li == 0 else h_p
        w_cat = _pad_wcat(p["weight"], p["self_weight"], f_layer, h_p,
                          matmul_dtype)
        scale, shift = _fold_bn(p["gamma"], p["beta"], p["mean"], p["var"], h_p)
        cur = gcn_layer(cur, adj_p, w_cat, scale, shift,
                        tile=tile, out_dtype=matmul_dtype)
        # TODO(synk): training-mode dropout and the Ortho=True weight
        # orthogonalization branch are not implemented (eval-mode forward).
    cur = _trim_h(cur, h, h_p)
    if not dense:
        out_p = _doconcat(cur, x_in, aggrmethod, tile)
    else:
        out_p = _doconcat(cur, denseout, aggrmethod, tile)
    return out_p[:n]


def init_gcn_params(key, f_in, f_out):
    """Matches GraphConvolutionBS.reset_parameters + BatchNorm1d defaults."""
    kw, ks = jax.random.split(key)
    stdv = 1.0 / math.sqrt(f_out)
    return dict(
        weight=jax.random.uniform(kw, (f_in, f_out), jnp.float32, -stdv, stdv),
        self_weight=jax.random.uniform(ks, (f_in, f_out), jnp.float32,
                                       -stdv, stdv),
        gamma=jnp.ones((f_out,), jnp.float32),
        beta=jnp.zeros((f_out,), jnp.float32),
        mean=jnp.zeros((f_out,), jnp.float32),
        var=jnp.ones((f_out,), jnp.float32),
    )


# ---------------- pure-JAX reference (for correctness check) ----------------
def _gcn_layer_ref(x, adj, p, eps=1e-5):
    out = adj @ (x @ p["weight"]) + x @ p["self_weight"]
    out = (out - p["mean"]) / jnp.sqrt(p["var"] + eps) * p["gamma"] + p["beta"]
    return jnp.maximum(out, 0.0)


def _block_ref(params_list, x, adj):
    inp = x
    for p in params_list:
        x = _gcn_layer_ref(x, adj, p)
    return jnp.concatenate((x, inp), axis=1)


if __name__ == "__main__":
    N, in_features, hidden, nbaselayer = 256, 64, 128, 2

    key = jax.random.PRNGKey(0)
    kx, ka, kp = jax.random.split(key, 3)

    # node features
    x = jax.random.normal(kx, (N, in_features), jnp.float32)

    # deterministic dense row-normalized adjacency with self-loops
    a = (jax.random.uniform(ka, (N, N)) < 0.05).astype(jnp.float32)
    a = jnp.clip(a + a.T + jnp.eye(N, dtype=jnp.float32), 0.0, 1.0)
    adj = a / jnp.sum(a, axis=1, keepdims=True)

    # per-layer parameters: layer 0 is in->hidden, rest hidden->hidden
    keys = jax.random.split(kp, nbaselayer)
    params_list = [init_gcn_params(keys[0], in_features, hidden)]
    for i in range(1, nbaselayer):
        params_list.append(init_gcn_params(keys[i], hidden, hidden))

    ref = _block_ref(params_list, x, adj)

    # f32 MXU path: must match the reference tightly.
    out_f32 = graph_base_block_forward(params_list, x, adj,
                                       matmul_dtype=jnp.float32)
    out_f32 = jax.block_until_ready(out_f32)
    assert out_f32.shape == (N, hidden + in_features), out_f32.shape
    assert jnp.allclose(out_f32, ref, atol=1e-4, rtol=1e-4), (
        float(jnp.max(jnp.abs(out_f32 - ref))))

    # Default path: bf16 MXU operands (f32 accumulation) — halves the
    # HBM-bound adjacency stream on v5e/v6e/v7x.
    out_bf16 = graph_base_block_forward(params_list, x, adj)
    out_bf16 = jax.block_until_ready(out_bf16).astype(jnp.float32)
    assert out_bf16.shape == (N, hidden + in_features), out_bf16.shape
    assert jnp.allclose(out_bf16, ref, atol=5e-2, rtol=5e-2), (
        float(jnp.max(jnp.abs(out_bf16 - ref))))

    print("KERNEL_OK")
</pallas_src>

<mosaic_0001>
module attributes {stable_mosaic.version = 11 : i64} {
  func.func @_support_kernel(%arg0: i32, %arg1: memref<128x64xf32, #tpu.memory_space<vmem>>, %arg2: memref<64x256xf32, #tpu.memory_space<vmem>>, %arg3: memref<128x256xf32, #tpu.memory_space<vmem>>) attributes {dimension_semantics = [#tpu.dimension_semantics<parallel>], iteration_bounds = array<i64: 2>, scalar_prefetch = 0 : i64, scratch_operands = 0 : i64, tpu.core_type = #tpu.core_type<tc>, window_params = [{transform_indices = @transform_0, window_bounds = array<i64: 128, 64>}, {pipeline_mode = #tpu.pipeline_mode<synchronous>, transform_indices = @transform_1, window_bounds = array<i64: 64, 256>}, {transform_indices = @transform_2, window_bounds = array<i64: 128, 256>}]} {
    %c0 = arith.constant 0 : index
    %c0_0 = arith.constant 0 : index
    %0 = vector.load %arg1[%c0, %c0_0] : memref<128x64xf32, #tpu.memory_space<vmem>>, vector<128x64xf32>
    %c0_1 = arith.constant 0 : index
    %c0_2 = arith.constant 0 : index
    %1 = vector.load %arg2[%c0_1, %c0_2] : memref<64x256xf32, #tpu.memory_space<vmem>>, vector<64x256xf32>
    %cst = arith.constant dense<0.000000e+00> : vector<128x256xf32>
    %2 = tpu.matmul %0, %1, %cst {dimension_numbers = #tpu.dot_dimension_numbers<[1], [0], [0], [1], [0, 0, 1, 1], [], []>} : vector<128x64xf32>, vector<64x256xf32>, vector<128x256xf32> -> vector<128x256xf32>
    %c0_3 = arith.constant 0 : index
    %c0_4 = arith.constant 0 : index
    %3 = vector.load %arg3[%c0_3, %c0_4] : memref<128x256xf32, #tpu.memory_space<vmem>>, vector<128x256xf32>
    tpu.vector_store %arg3[%c0_3, %c0_4], %2 {strides = array<i32>} : memref<128x256xf32, #tpu.memory_space<vmem>>, vector<128x256xf32>,
    return
  }
  func.func @transform_0(%arg0: i32) -> (i32, i32) {
    %c0_i32 = arith.constant 0 : i32
    %c0_i32_0 = arith.constant 0 : i32
    return %arg0, %c0_i32 : i32, i32
  }
  func.func @transform_1(%arg0: i32) -> (i32, i32) {
    %c0_i32 = arith.constant 0 : i32
    %c0_i32_0 = arith.constant 0 : i32
    %c0_i32_1 = arith.constant 0 : i32
    return %c0_i32, %c0_i32_0 : i32, i32
  }
  func.func @transform_2(%arg0: i32) -> (i32, i32) {
    %c0_i32 = arith.constant 0 : i32
    %c0_i32_0 = arith.constant 0 : i32
    return %arg0, %c0_i32 : i32, i32
  }
}

module attributes {stable_mosaic.version = 11 : i64} {
  func.func @_aggregate_kernel(%arg0: i32, %arg1: i32, %arg2: memref<128x128xf32, #tpu.memory_space<vmem>>, %arg3: memref<256x128xf32, #tpu.memory_space<vmem>>, %arg4: memref<128x128xf32, #tpu.memory_space<vmem>>, %arg5: memref<1x128xf32, #tpu.memory_space<vmem>>, %arg6: memref<1x128xf32, #tpu.memory_space<vmem>>, %arg7: memref<128x128xf32, #tpu.memory_space<vmem>>, %arg8: memref<128x128xf32, #tpu.memory_space<vmem>>) attributes {dimension_semantics = [#tpu.dimension_semantics<parallel>, #tpu.dimension_semantics<arbitrary>], iteration_bounds = array<i64: 2, 2>, scalar_prefetch = 0 : i64, scratch_operands = 1 : i64, tpu.core_type = #tpu.core_type<tc>, window_params = [{transform_indices = @transform_0, window_bounds = array<i64: 128, 128>}, {transform_indices = @transform_1, window_bounds = array<i64: 256, 128>}, {transform_indices = @transform_2, window_bounds = array<i64: 128, 128>}, {pipeline_mode = #tpu.pipeline_mode<synchronous>, transform_indices = @transform_3, window_bounds = array<i64: 1, 128>}, {pipeline_mode = #tpu.pipeline_mode<synchronous>, transform_indices = @transform_4, window_bounds = array<i64: 1, 128>}, {transform_indices = @transform_5, window_bounds = array<i64: 128, 128>}]} {
    %c0_i32 = arith.constant 0 : i32
    %0 = arith.cmpi eq, %arg1, %c0_i32 : i32
    %1 = arith.extui %0 : i1 to i32
    %c0_i32_0 = arith.constant 0 : i32
    %2 = arith.cmpi ne, %1, %c0_i32_0 : i32
    scf.if %2 {
      %c0_8 = arith.constant 0 : index
      %c0_9 = arith.constant 0 : index
      %15 = vector.load %arg4[%c0_8, %c0_9] : memref<128x128xf32, #tpu.memory_space<vmem>>, vector<128x128xf32>
      %c0_10 = arith.constant 0 : index
      %c0_11 = arith.constant 0 : index
      %16 = vector.load %arg8[%c0_10, %c0_11] : memref<128x128xf32, #tpu.memory_space<vmem>>, vector<128x128xf32>
      tpu.vector_store %arg8[%c0_10, %c0_11], %15 {strides = array<i32>} : memref<128x128xf32, #tpu.memory_space<vmem>>, vector<128x128xf32>,
    } else {
    }
    %c128_i32 = arith.constant 128 : i32
    %3 = arith.muli %arg1, %c128_i32 : i32
    %4 = tpu.assume_multiple %3, 128 : i32
    %5 = arith.index_cast %4 : i32 to index
    %c0 = arith.constant 0 : index
    %6 = vector.load %arg3[%5, %c0] : memref<256x128xf32, #tpu.memory_space<vmem>>, vector<128x128xf32>
    %c0_1 = arith.constant 0 : index
    %c0_2 = arith.constant 0 : index
    %7 = vector.load %arg8[%c0_1, %c0_2] : memref<128x128xf32, #tpu.memory_space<vmem>>, vector<128x128xf32>
    %c0_3 = arith.constant 0 : index
    %c0_4 = arith.constant 0 : index
    %8 = vector.load %arg2[%c0_3, %c0_4] : memref<128x128xf32, #tpu.memory_space<vmem>>, vector<128x128xf32>
    %cst = arith.constant dense<0.000000e+00> : vector<128x128xf32>
    %9 = tpu.matmul %8, %6, %cst {dimension_numbers = #tpu.dot_dimension_numbers<[1], [0], [0], [1], [0, 0, 1, 1], [], []>} : vector<128x128xf32>, vector<128x128xf32>, vector<128x128xf32> -> vector<128x128xf32>
    %10 = arith.addf %7, %9 : vector<128x128xf32>
    %c0_5 = arith.constant 0 : index
    %c0_6 = arith.constant 0 : index
    %11 = vector.load %arg8[%c0_5, %c0_6] : memref<128x128xf32, #tpu.memory_space<vmem>>, vector<128x128xf32>
    tpu.vector_store %arg8[%c0_5, %c0_6], %10 {strides = array<i32>} : memref<128x128xf32, #tpu.memory_space<vmem>>, vector<128x128xf32>,
    %c1_i32 = arith.constant 1 : i32
    %12 = arith.cmpi eq, %arg1, %c1_i32 : i32
    %13 = arith.extui %12 : i1 to i32
    %c0_i32_7 = arith.constant 0 : i32
    %14 = arith.cmpi ne, %13, %c0_i32_7 : i32
    scf.if %14 {
      %c0_8 = arith.constant 0 : index
      %c0_9 = arith.constant 0 : index
      %15 = vector.load %arg8[%c0_8, %c0_9] : memref<128x128xf32, #tpu.memory_space<vmem>>, vector<128x128xf32>
      %c0_10 = arith.constant 0 : index
      %c0_11 = arith.constant 0 : index
      %16 = vector.load %arg5[%c0_10, %c0_11] : memref<1x128xf32, #tpu.memory_space<vmem>>, vector<1x128xf32>
      %17 = vector.broadcast %16 : vector<1x128xf32> to vector<128x128xf32>
      %18 = arith.mulf %15, %17 : vector<128x128xf32>
      %c0_12 = arith.constant 0 : index
      %c0_13 = arith.constant 0 : index
      %19 = vector.load %arg6[%c0_12, %c0_13] : memref<1x128xf32, #tpu.memory_space<vmem>>, vector<1x128xf32>
      %20 = vector.broadcast %19 : vector<1x128xf32> to vector<128x128xf32>
      %21 = arith.addf %18, %20 : vector<128x128xf32>
      %cst_14 = arith.constant 0.000000e+00 : f32
      %22 = vector.broadcast %cst_14 : f32 to vector<128x128xf32>
      %23 = arith.maximumf %21, %22 : vector<128x128xf32>
      %c0_15 = arith.constant 0 : index
      %c0_16 = arith.constant 0 : index
      %24 = vector.load %arg7[%c0_15, %c0_16] : memref<128x128xf32, #tpu.memory_space<vmem>>, vector<128x128xf32>
      tpu.vector_store %arg7[%c0_15, %c0_16], %23 {strides = array<i32>} : memref<128x128xf32, #tpu.memory_space<vmem>>, vector<128x128xf32>,
    } else {
    }
    return
  }
  func.func @transform_0(%arg0: i32, %arg1: i32) -> (i32, i32) {
    %c0_i32 = arith.constant 0 : i32
    return %arg0, %arg1 : i32, i32
  }
  func.func @transform_1(%arg0: i32, %arg1: i32) -> (i32, i32) {
    %c0_i32 = arith.constant 0 : i32
    %c0_i32_0 = arith.constant 0 : i32
    %c0_i32_1 = arith.constant 0 : i32
    return %c0_i32, %c0_i32_0 : i32, i32
  }
  func.func @transform_2(%arg0: i32, %arg1: i32) -> (i32, i32) {
    %c1_i32 = arith.constant 1 : i32
    %c0_i32 = arith.constant 0 : i32
    return %arg0, %c1_i32 : i32, i32
  }
  func.func @transform_3(%arg0: i32, %arg1: i32) -> (i32, i32) {
    %c0_i32 = arith.constant 0 : i32
    %c0_i32_0 = arith.constant 0 : i32
    %c0_i32_1 = arith.constant 0 : i32
    return %c0_i32, %c0_i32_0 : i32, i32
  }
  func.func @transform_4(%arg0: i32, %arg1: i32) -> (i32, i32) {
    %c0_i32 = arith.constant 0 : i32
    %c0_i32_0 = arith.constant 0 : i32
    %c0_i32_1 = arith.constant 0 : i32
    return %c0_i32, %c0_i32_0 : i32, i32
  }
  func.func @transform_5(%arg0: i32, %arg1: i32) -> (i32, i32) {
    %c0_i32 = arith.constant 0 : i32
    %c0_i32_0 = arith.constant 0 : i32
    return %arg0, %c0_i32 : i32, i32
  }
}

module attributes {stable_mosaic.version = 11 : i64} {
  func.func @_support_kernel(%arg0: i32, %arg1: memref<128x128xf32, #tpu.memory_space<vmem>>, %arg2: memref<128x256xf32, #tpu.memory_space<vmem>>, %arg3: memref<128x256xf32, #tpu.memory_space<vmem>>) attributes {dimension_semantics = [#tpu.dimension_semantics<parallel>], iteration_bounds = array<i64: 2>, scalar_prefetch = 0 : i64, scratch_operands = 0 : i64, tpu.core_type = #tpu.core_type<tc>, window_params = [{transform_indices = @transform_0, window_bounds = array<i64: 128, 128>}, {pipeline_mode = #tpu.pipeline_mode<synchronous>, transform_indices = @transform_1, window_bounds = array<i64: 128, 256>}, {transform_indices = @transform_2, window_bounds = array<i64: 128, 256>}]} {
    %c0 = arith.constant 0 : index
    %c0_0 = arith.constant 0 : index
    %0 = vector.load %arg1[%c0, %c0_0] : memref<128x128xf32, #tpu.memory_space<vmem>>, vector<128x128xf32>
    %c0_1 = arith.constant 0 : index
    %c0_2 = arith.constant 0 : index
    %1 = vector.load %arg2[%c0_1, %c0_2] : memref<128x256xf32, #tpu.memory_space<vmem>>, vector<128x256xf32>
    %cst = arith.constant dense<0.000000e+00> : vector<128x256xf32>
    %2 = tpu.matmul %0, %1, %cst {dimension_numbers = #tpu.dot_dimension_numbers<[1], [0], [0], [1], [0, 0, 1, 1], [], []>} : vector<128x128xf32>, vector<128x256xf32>, vector<128x256xf32> -> vector<128x256xf32>
    %c0_3 = arith.constant 0 : index
    %c0_4 = arith.constant 0 : index
    %3 = vector.load %arg3[%c0_3, %c0_4] : memref<128x256xf32, #tpu.memory_space<vmem>>, vector<128x256xf32>
    tpu.vector_store %arg3[%c0_3, %c0_4], %2 {strides = array<i32>} : memref<128x256xf32, #tpu.memory_space<vmem>>, vector<128x256xf32>,
    return
  }
  func.func @transform_0(%arg0: i32) -> (i32, i32) {
    %c0_i32 = arith.constant 0 : i32
    %c0_i32_0 = arith.constant 0 : i32
    return %arg0, %c0_i32 : i32, i32
  }
  func.func @transform_1(%arg0: i32) -> (i32, i32) {
    %c0_i32 = arith.constant 0 : i32
    %c0_i32_0 = arith.constant 0 : i32
    %c0_i32_1 = arith.constant 0 : i32
    return %c0_i32, %c0_i32_0 : i32, i32
  }
  func.func @transform_2(%arg0: i32) -> (i32, i32) {
    %c0_i32 = arith.constant 0 : i32
    %c0_i32_0 = arith.constant 0 : i32
    return %arg0, %c0_i32 : i32, i32
  }
}

module attributes {stable_mosaic.version = 11 : i64} {
  func.func @_concat2_kernel(%arg0: i32, %arg1: memref<128x128xf32, #tpu.memory_space<vmem>>, %arg2: memref<128x64xf32, #tpu.memory_space<vmem>>, %arg3: memref<128x192xf32, #tpu.memory_space<vmem>>) attributes {dimension_semantics = [#tpu.dimension_semantics<parallel>], iteration_bounds = array<i64: 2>, scalar_prefetch = 0 : i64, scratch_operands = 0 : i64, tpu.core_type = #tpu.core_type<tc>, window_params = [{transform_indices = @transform_0, window_bounds = array<i64: 128, 128>}, {transform_indices = @transform_1, window_bounds = array<i64: 128, 64>}, {transform_indices = @transform_2, window_bounds = array<i64: 128, 192>}]} {
    %c0 = arith.constant 0 : index
    %c0_0 = arith.constant 0 : index
    %0 = vector.load %arg1[%c0, %c0_0] : memref<128x128xf32, #tpu.memory_space<vmem>>, vector<128x128xf32>
    %c0_1 = arith.constant 0 : index
    %c0_2 = arith.constant 0 : index
    %1 = vector.load %arg3[%c0_1, %c0_2] : memref<128x192xf32, #tpu.memory_space<vmem>>, vector<128x128xf32>
    tpu.vector_store %arg3[%c0_1, %c0_2], %0 {strides = array<i32>} : memref<128x192xf32, #tpu.memory_space<vmem>>, vector<128x128xf32>,
    %c0_3 = arith.constant 0 : index
    %c0_4 = arith.constant 0 : index
    %2 = vector.load %arg2[%c0_3, %c0_4] : memref<128x64xf32, #tpu.memory_space<vmem>>, vector<128x64xf32>
    %c0_5 = arith.constant 0 : index
    %c128 = arith.constant 128 : index
    %3 = vector.load %arg3[%c0_5, %c128] : memref<128x192xf32, #tpu.memory_space<vmem>>, vector<128x64xf32>
    tpu.vector_store %arg3[%c0_5, %c128], %2 {strides = array<i32>} : memref<128x192xf32, #tpu.memory_space<vmem>>, vector<128x64xf32>,
    return
  }
  func.func @transform_0(%arg0: i32) -> (i32, i32) {
    %c0_i32 = arith.constant 0 : i32
    %c0_i32_0 = arith.constant 0 : i32
    return %arg0, %c0_i32 : i32, i32
  }
  func.func @transform_1(%arg0: i32) -> (i32, i32) {
    %c0_i32 = arith.constant 0 : i32
    %c0_i32_0 = arith.constant 0 : i32
    return %arg0, %c0_i32 : i32, i32
  }
  func.func @transform_2(%arg0: i32) -> (i32, i32) {
    %c0_i32 = arith.constant 0 : i32
    %c0_i32_0 = arith.constant 0 : i32
    return %arg0, %c0_i32 : i32, i32
  }
}

</mosaic_0001>

<llo_original>
// kernel: graph_base_block_forward.9
$region0: #{graph_base_block_forward.9}
  #allocation0 [shape = 'u32[]', space=smem, size = 0x4, offset = 0x4, fixed_abs, tag = 'smem constant byte address 0x4 - core index']
  #allocation1 [shape = 'u32[144,128]{1,0:T(1,128)}', space=vmem, size = 0x12000, scoped, tag = 'internal scratch']
  %s0 = inlined_call_operand.vmem [shape: f32[256,128], index: 0, kind: input, shape index: {}]
  %s1 = inlined_call_operand.vmem [shape: f32[256,64], index: 1, kind: input, shape index: {}]
  %s2 = inlined_call_operand.vmem [shape: f32[256,192], index: 2, kind: output, shape index: {}]
  %s3 = sld [smem:[#allocation0]]
  $region41: #{graph_base_block_forward.9} parent=0
    _
  %s5 = ssub.s32 1, %s3
  %s6 = scalar_select 0, %s5, %s3
  loop: start=0, step=1, limit=4
  $region2: #{graph_base_block_forward.9} parent=0 // loop_pre_header
    _
  $region3: #{graph_base_block_forward.9} parent=0 // loop_header
    %s8 = sphi 0, %s12
    %p9 = scmp.ge.s32.totalorder %s8, 4
    %s18 = sphi 0, %s20
    %s21 = sphi 0, %s18
    %s22 = sphi 0, %s21
    %s38 = sphi 0, %s22
    %s44 = sphi 0, %s46
    %s47 = sphi 0, %s44
    %s48 = sphi 0, %s47
    %s64 = sphi 0, %s48
    %s70 = sphi 0, %s72
    %s73 = sphi 0, %s70
    %s74 = sphi 0, %s73
    %s90 = sphi 0, %s74
  $region4: #{graph_base_block_forward.9} parent=0 // loop_header_branch
    %11 = sbr.rel (%p9) target = $region8
  $region5: #{graph_base_block_forward.9} parent=0 // loop_body
    %s13 = ssub.s32 %s8, 1
    %s14 = ssub.s32 %s8, 2
    %s15 = sadd.s32 %s8, 1
    %s16 = ssub.s32 %s8, %s15
    %p17 = scmp.eq.s32.totalorder %s16, 0
    %s19 = sadd.s32 %s18, 1
    %s20 = scalar_select %p17, %s18, %s19
    %p23 = pneg %p17
    %p24 = scmp.eq.s32.totalorder %s8, 1
    %p25 = por %p23, %p24
    %p26 = scmp.ne.s32.totalorder %s18, %s21
    %p27 = scmp.eq.s32.totalorder %s8, 0
    %p28 = por %p26, %p27
    %p29 = scmp.ne.s32.totalorder %s18, %s21
    %p30 = scmp.eq.s32.totalorder %s13, 1
    %p31 = por %p29, %p30
    %p32 = scmp.ne.s32.totalorder %s21, %s22
    %p33 = scmp.eq.s32.totalorder %s13, 0
    %p34 = por %p32, %p33
    %p35 = scmp.ne.s32.totalorder %s21, %s22
    %p36 = scmp.eq.s32.totalorder %s14, 1
    %p37 = por %p35, %p36
    %p39 = scmp.ne.s32.totalorder %s22, %s38
    %p40 = scmp.eq.s32.totalorder %s14, 0
    %p41 = por %p39, %p40
    %s42 = ssub.s32 %s8, %s15
    %p43 = scmp.eq.s32.totalorder %s42, 0
    %s45 = sadd.s32 %s44, 1
    %s46 = scalar_select %p43, %s44, %s45
    %p49 = pneg %p43
    %p50 = scmp.eq.s32.totalorder %s8, 1
    %p51 = por %p49, %p50
    %p52 = scmp.ne.s32.totalorder %s44, %s47
    %p53 = scmp.eq.s32.totalorder %s8, 0
    %p54 = por %p52, %p53
    %p55 = scmp.ne.s32.totalorder %s44, %s47
    %p56 = scmp.eq.s32.totalorder %s13, 1
    %p57 = por %p55, %p56
    %p58 = scmp.ne.s32.totalorder %s47, %s48
    %p59 = scmp.eq.s32.totalorder %s13, 0
    %p60 = por %p58, %p59
    %p61 = scmp.ne.s32.totalorder %s47, %s48
    %p62 = scmp.eq.s32.totalorder %s14, 1
    %p63 = por %p61, %p62
    %p65 = scmp.ne.s32.totalorder %s48, %s64
    %p66 = scmp.eq.s32.totalorder %s14, 0
    %p67 = por %p65, %p66
    %s68 = ssub.s32 %s8, %s15
    %p69 = scmp.eq.s32.totalorder %s68, 0
    %s71 = sadd.s32 %s70, 1
    %s72 = scalar_select %p69, %s70, %s71
    %p75 = pneg %p69
    %p76 = scmp.eq.s32.totalorder %s8, 1
    %p77 = por %p75, %p76
    %p78 = scmp.ne.s32.totalorder %s70, %s73
    %p79 = scmp.eq.s32.totalorder %s8, 0
    %p80 = por %p78, %p79
    %p81 = scmp.ne.s32.totalorder %s70, %s73
    %p82 = scmp.eq.s32.totalorder %s13, 1
    %p83 = por %p81, %p82
    %p84 = scmp.ne.s32.totalorder %s73, %s74
    %p85 = scmp.eq.s32.totalorder %s13, 0
    %p86 = por %p84, %p85
    %p87 = scmp.ne.s32.totalorder %s73, %s74
    %p88 = scmp.eq.s32.totalorder %s14, 1
    %p89 = por %p87, %p88
    %p91 = scmp.ne.s32.totalorder %s74, %s90
    %p92 = scmp.eq.s32.totalorder %s14, 0
    %p93 = por %p91, %p92
    %p94 = scmp.le.s32.totalorder 1, %s8
    %p95 = scmp.lt.s32.totalorder %s8, 3
    %p96 = pnand %p94, %p95
    %p97 = pneg %p96
    // Predicated region
    $region9: #{graph_base_block_forward.9} parent=5 // pred_check
      _
    $region10: #{graph_base_block_forward.9} parent=5 // pred_check_branch
      %99 = sbr.rel (%p96) target = $region12
    $region11: #{graph_base_block_forward.9} parent=5 // pred_region
      %s100 = ssub.s32 %s8, 1
    $region12: #{graph_base_block_forward.9} parent=5 // pred_fallthru
      _
    %p101 = scmp.lt.s32.totalorder %s8, 2
    // Predicated region
    $region13: #{graph_base_block_forward.9} parent=5 // pred_check
      %p102 = pneg %p101
    $region14: #{graph_base_block_forward.9} parent=5 // pred_check_branch
      %104 = sbr.rel (%p102) target = $region16
    $region15: #{graph_base_block_forward.9} parent=5 // pred_region
      // Predicated region
      $region17: #{graph_base_block_forward.9} parent=15 // pred_check
        %p105 = pneg %p28
      $region18: #{graph_base_block_forward.9} parent=15 // pred_check_branch
        %107 = sbr.rel (%p105) target = $region20
      $region19: #{graph_base_block_forward.9} parent=15 // pred_region
        %s108 = smul.u32 16, %s8
        %p109 = scmp.lt.s32.totalorder %s108, 31
        %s110 = scalar_select %p109, %s108, 31
        %s111 = smul.addr %s110, 8
        %s112 = scalar_lea.vmem %s0, %s111
        %s113 = smul.u32 16, %s8
      $region20: #{graph_base_block_forward.9} parent=15 // pred_fallthru
        _
      // Predicated region
      $region21: #{graph_base_block_forward.9} parent=15 // pred_check
        %p114 = pneg %p54
      $region22: #{graph_base_block_forward.9} parent=15 // pred_check_branch
        %116 = sbr.rel (%p114) target = $region24
      $region23: #{graph_base_block_forward.9} parent=15 // pred_region
        %s117 = smul.u32 16, %s8
        %p118 = scmp.lt.s32.totalorder %s117, 31
        %s119 = scalar_select %p118, %s117, 31
        %s120 = smul.addr %s119, 8
        %s121 = scalar_lea.vmem %s1, %s120
        %s122 = smul.u32 16, %s8
      $region24: #{graph_base_block_forward.9} parent=15 // pred_fallthru
        _
    $region16: #{graph_base_block_forward.9} parent=5 // pred_fallthru
      _
    %p123 = scmp.le.s32.totalorder 1, %s8
    %p124 = scmp.lt.s32.totalorder %s8, 3
    %p125 = pnand %p123, %p124
    %p126 = pneg %p125
    // Predicated region
    $region25: #{graph_base_block_forward.9} parent=5 // pred_check
      _
    $region26: #{graph_base_block_forward.9} parent=5 // pred_check_branch
      %128 = sbr.rel (%p125) target = $region28
    $region27: #{graph_base_block_forward.9} parent=5 // pred_region
      %s129 = ssub.s32 %s8, 1
      %s130 = smul.u32 16, %s13
      %p131 = scmp.lt.s32.totalorder %s130, 31
      %s132 = scalar_select %p131, %s130, 31
      %s133 = smul.addr %s132, 8
      %s134 = scalar_lea.vmem %s0, %s133
      %p135 = pneg %p34
      %p136 = pneg %p31
      %s137 = smul.u32 16, %s13
      %p138 = scmp.lt.s32.totalorder %s137, 31
      %s139 = scalar_select %p138, %s137, 31
      %s140 = smul.addr %s139, 8
      %s141 = scalar_lea.vmem %s1, %s140
      %p142 = pneg %p60
      %p143 = pneg %p57
      %p144 = pneg %p86
      %p145 = pneg %p83
      %s146 = smul.u32 16, %s13
      %p147 = scmp.lt.s32.totalorder %s146, 31
      %s148 = scalar_select %p147, %s146, 31
      %s149 = smul.addr %s148, 2
      %s150 = smul.addr %s149, 8
      %s151 = scalar_lea.vmem %s2, %s150
      %s152 = smul.u32 16, %s13
      %p153 = scmp.lt.s32.totalorder %s152, 31
      %s154 = scalar_select %p153, %s152, 31
      %s155 = smul.addr %s154, 8
      %s156 = scalar_lea.vmem %s0, %s155
      %s157 = smul.u32 16, %s13
      %s158 = smul.u32 16, %s13
      %p159 = scmp.lt.s32.totalorder %s158, 31
      %s160 = scalar_select %p159, %s158, 31
      %s161 = smul.addr %s160, 8
      %s162 = scalar_lea.vmem %s1, %s161
      %s163 = smul.u32 16, %s13
      %s164 = smul.u32 16, %s13
      %p165 = scmp.lt.s32.totalorder %s164, 31
      %s166 = scalar_select %p165, %s164, 31
      %s167 = smul.addr %s166, 2
      %s168 = smul.addr %s167, 8
      %s169 = scalar_lea.vmem %s2, %s168
      %s170 = smul.u32 16, %s13
      %v171 = vld [vmem:[%s156] sm:$0xff]
      %v172 = vld [vmem:[%s156 + $0x8] sm:$0xff]
      %v173 = vld [vmem:[%s156 + $0x10] sm:$0xff]
      %v174 = vld [vmem:[%s156 + $0x18] sm:$0xff]
      %v175 = vld [vmem:[%s156 + $0x20] sm:$0xff]
      %v176 = vld [vmem:[%s156 + $0x28] sm:$0xff]
      %v177 = vld [vmem:[%s156 + $0x30] sm:$0xff]
      %v178 = vld [vmem:[%s156 + $0x38] sm:$0xff]
      %v179 = vld [vmem:[%s156 + $0x40] sm:$0xff]
      %v180 = vld [vmem:[%s156 + $0x48] sm:$0xff]
      %v181 = vld [vmem:[%s156 + $0x50] sm:$0xff]
      %v182 = vld [vmem:[%s156 + $0x58] sm:$0xff]
      %v183 = vld [vmem:[%s156 + $0x60] sm:$0xff]
      %v184 = vld [vmem:[%s156 + $0x68] sm:$0xff]
      %v185 = vld [vmem:[%s156 + $0x70] sm:$0xff]
      %v186 = vld [vmem:[%s156 + $0x78] sm:$0xff]
      %187 = vst [vmem:[%s169] sm:$0xff] %v171
      %188 = vst [vmem:[%s169 + $0x10] sm:$0xff] %v172
      %189 = vst [vmem:[%s169 + $0x20] sm:$0xff] %v173
      %190 = vst [vmem:[%s169 + $0x30] sm:$0xff] %v174
      %191 = vst [vmem:[%s169 + $0x40] sm:$0xff] %v175
      %192 = vst [vmem:[%s169 + $0x50] sm:$0xff] %v176
      %193 = vst [vmem:[%s169 + $0x60] sm:$0xff] %v177
      %194 = vst [vmem:[%s169 + $0x70] sm:$0xff] %v178
      %195 = vst [vmem:[%s169 + $0x80] sm:$0xff] %v179
      %196 = vst [vmem:[%s169 + $0x90] sm:$0xff] %v180
      %197 = vst [vmem:[%s169 + $0xa0] sm:$0xff] %v181
      %198 = vst [vmem:[%s169 + $0xb0] sm:$0xff] %v182
      %199 = vst [vmem:[%s169 + $0xc0] sm:$0xff] %v183
      %200 = vst [vmem:[%s169 + $0xd0] sm:$0xff] %v184
      %201 = vst [vmem:[%s169 + $0xe0] sm:$0xff] %v185
      %202 = vst [vmem:[%s169 + $0xf0] sm:$0xff] %v186
      %v203 = vld [vmem:[%s162] sm:$0xff]
      %v204 = vld [vmem:[%s162 + $0x8] sm:$0xff]
      %v205 = vld [vmem:[%s162 + $0x10] sm:$0xff]
      %v206 = vld [vmem:[%s162 + $0x18] sm:$0xff]
      %v207 = vld [vmem:[%s162 + $0x20] sm:$0xff]
      %v208 = vld [vmem:[%s162 + $0x28] sm:$0xff]
      %v209 = vld [vmem:[%s162 + $0x30] sm:$0xff]
      %v210 = vld [vmem:[%s162 + $0x38] sm:$0xff]
      %v211 = vld [vmem:[%s162 + $0x40] sm:$0xff]
      %v212 = vld [vmem:[%s162 + $0x48] sm:$0xff]
      %v213 = vld [vmem:[%s162 + $0x50] sm:$0xff]
      %v214 = vld [vmem:[%s162 + $0x58] sm:$0xff]
      %v215 = vld [vmem:[%s162 + $0x60] sm:$0xff]
      %v216 = vld [vmem:[%s162 + $0x68] sm:$0xff]
      %v217 = vld [vmem:[%s162 + $0x70] sm:$0xff]
      %v218 = vld [vmem:[%s162 + $0x78] sm:$0xff]
      %vm219 = vcmask 523264
      %220 = vst.msk [vmem:[%s169 + $0x8] sm:$0xff] %vm219, %v203
      %221 = vst.msk [vmem:[%s169 + $0x18] sm:$0xff] %vm219, %v204
      %222 = vst.msk [vmem:[%s169 + $0x28] sm:$0xff] %vm219, %v205
      %223 = vst.msk [vmem:[%s169 + $0x38] sm:$0xff] %vm219, %v206
      %224 = vst.msk [vmem:[%s169 + $0x48] sm:$0xff] %vm219, %v207
      %225 = vst.msk [vmem:[%s169 + $0x58] sm:$0xff] %vm219, %v208
      %226 = vst.msk [vmem:[%s169 + $0x68] sm:$0xff] %vm219, %v209
      %227 = vst.msk [vmem:[%s169 + $0x78] sm:$0xff] %vm219, %v210
      %228 = vst.msk [vmem:[%s169 + $0x88] sm:$0xff] %vm219, %v211
      %229 = vst.msk [vmem:[%s169 + $0x98] sm:$0xff] %vm219, %v212
      %230 = vst.msk [vmem:[%s169 + $0xa8] sm:$0xff] %vm219, %v213
      %231 = vst.msk [vmem:[%s169 + $0xb8] sm:$0xff] %vm219, %v214
      %232 = vst.msk [vmem:[%s169 + $0xc8] sm:$0xff] %vm219, %v215
      %233 = vst.msk [vmem:[%s169 + $0xd8] sm:$0xff] %vm219, %v216
      %234 = vst.msk [vmem:[%s169 + $0xe8] sm:$0xff] %vm219, %v217
      %235 = vst.msk [vmem:[%s169 + $0xf8] sm:$0xff] %vm219, %v218
      %s236 = smul.u32 16, %s13
      %p237 = scmp.lt.s32.totalorder %s236, 31
      %s238 = scalar_select %p237, %s236, 31
      %s239 = smul.addr %s238, 2
      %s240 = smul.addr %s239, 8
      %s241 = scalar_lea.vmem %s2, %s240
      // Predicated region
      $region29: #{graph_base_block_forward.9} parent=27 // pred_check
        %p242 = pneg %p83
      $region30: #{graph_base_block_forward.9} parent=27 // pred_check_branch
        %244 = sbr.rel (%p242) target = $region32
      $region31: #{graph_base_block_forward.9} parent=27 // pred_region
        %s245 = smul.u32 16, %s13
      $region32: #{graph_base_block_forward.9} parent=27 // pred_fallthru
        _
    $region28: #{graph_base_block_forward.9} parent=5 // pred_fallthru
      _
    %p246 = scmp.le.s32.totalorder 2, %s8
    // Predicated region
    $region33: #{graph_base_block_forward.9} parent=5 // pred_check
      %p247 = pneg %p246
    $region34: #{graph_base_block_forward.9} parent=5 // pred_check_branch
      %249 = sbr.rel (%p247) target = $region36
    $region35: #{graph_base_block_forward.9} parent=5 // pred_region
      %s250 = ssub.s32 %s8, 2
      // Predicated region
      $region37: #{graph_base_block_forward.9} parent=35 // pred_check
        %p251 = pneg %p89
      $region38: #{graph_base_block_forward.9} parent=35 // pred_check_branch
        %253 = sbr.rel (%p251) target = $region40
      $region39: #{graph_base_block_forward.9} parent=35 // pred_region
        %s254 = smul.u32 16, %s14
        %p255 = scmp.lt.s32.totalorder %s254, 31
        %s256 = scalar_select %p255, %s254, 31
        %s257 = smul.addr %s256, 2
        %s258 = smul.addr %s257, 8
        %s259 = scalar_lea.vmem %s2, %s258
      $region40: #{graph_base_block_forward.9} parent=35 // pred_fallthru
        _
    $region36: #{graph_base_block_forward.9} parent=5 // pred_fallthru
      _
  $region6: #{graph_base_block_forward.9} parent=0 // loop_footer
    %s12 = sadd.s32 1, %s8
  $region7: #{graph_base_block_forward.9} parent=0 // loop_footer_branch
    %7 = sbr.rel target = $region3
  $region8: #{graph_base_block_forward.9} parent=0 // loop_exit
    _

// kernel: graph_base_block_forward.5
$region0: #{graph_base_block_forward.5}
  #allocation0 [shape = 'u32[]', space=smem, size = 0x4, offset = 0x4, fixed_abs, tag = 'smem constant byte address 0x4 - core index']
  #allocation1 [shape = 'u32[144,128]{1,0:T(1,128)}', space=vmem, size = 0x12000, scoped, tag = 'internal scratch']
  %s0 = inlined_call_operand.vmem [shape: f32[256,64], index: 0, kind: input, shape index: {}]
  %s1 = inlined_call_operand.vmem [shape: f32[64,256], index: 1, kind: input, shape index: {}]
  %s2 = inlined_call_operand.vmem [shape: f32[256,256], index: 2, kind: output, shape index: {}]
  %s3 = sld [smem:[#allocation0]]
  $region41: #{graph_base_block_forward.5} parent=0
    _
  %s5 = ssub.s32 1, %s3
  %s6 = scalar_select 0, %s5, %s3
  loop: start=0, step=1, limit=4
  $region2: #{graph_base_block_forward.5} parent=0 // loop_pre_header
    _
  $region3: #{graph_base_block_forward.5} parent=0 // loop_header
    %s8 = sphi 0, %s12
    %p9 = scmp.ge.s32.totalorder %s8, 4
    %s18 = sphi 0, %s20
    %s21 = sphi 0, %s18
    %s22 = sphi 0, %s21
    %s38 = sphi 0, %s22
    %s42 = sphi 0, %s42
    %s44 = sphi 0, %s42
    %s45 = sphi 0, %s44
    %s59 = sphi 0, %s45
    %s65 = sphi 0, %s67
    %s68 = sphi 0, %s65
    %s69 = sphi 0, %s68
    %s85 = sphi 0, %s69
  $region4: #{graph_base_block_forward.5} parent=0 // loop_header_branch
    %11 = sbr.rel (%p9) target = $region8
  $region5: #{graph_base_block_forward.5} parent=0 // loop_body
    %s13 = ssub.s32 %s8, 1
    %s14 = ssub.s32 %s8, 2
    %s15 = sadd.s32 %s8, 1
    %s16 = ssub.s32 %s8, %s15
    %p17 = scmp.eq.s32.totalorder %s16, 0
    %s19 = sadd.s32 %s18, 1
    %s20 = scalar_select %p17, %s18, %s19
    %p23 = pneg %p17
    %p24 = scmp.eq.s32.totalorder %s8, 1
    %p25 = por %p23, %p24
    %p26 = scmp.ne.s32.totalorder %s18, %s21
    %p27 = scmp.eq.s32.totalorder %s8, 0
    %p28 = por %p26, %p27
    %p29 = scmp.ne.s32.totalorder %s18, %s21
    %p30 = scmp.eq.s32.totalorder %s13, 1
    %p31 = por %p29, %p30
    %p32 = scmp.ne.s32.totalorder %s21, %s22
    %p33 = scmp.eq.s32.totalorder %s13, 0
    %p34 = por %p32, %p33
    %p35 = scmp.ne.s32.totalorder %s21, %s22
    %p36 = scmp.eq.s32.totalorder %s14, 1
    %p37 = por %p35, %p36
    %p39 = scmp.ne.s32.totalorder %s22, %s38
    %p40 = scmp.eq.s32.totalorder %s14, 0
    %p41 = por %p39, %p40
    %s43 = sadd.s32 %s42, 1
    %p46 = scmp.eq.s32.totalorder %s8, 1
    %p47 = scmp.ne.s32.totalorder %s42, %s44
    %p48 = scmp.eq.s32.totalorder %s8, 0
    %p49 = por %p47, %p48
    %p50 = scmp.ne.s32.totalorder %s42, %s44
    %p51 = scmp.eq.s32.totalorder %s13, 1
    %p52 = por %p50, %p51
    %p53 = scmp.ne.s32.totalorder %s44, %s45
    %p54 = scmp.eq.s32.totalorder %s13, 0
    %p55 = por %p53, %p54
    %p56 = scmp.ne.s32.totalorder %s44, %s45
    %p57 = scmp.eq.s32.totalorder %s14, 1
    %p58 = por %p56, %p57
    %p60 = scmp.ne.s32.totalorder %s45, %s59
    %p61 = scmp.eq.s32.totalorder %s14, 0
    %p62 = por %p60, %p61
    %s63 = ssub.s32 %s8, %s15
    %p64 = scmp.eq.s32.totalorder %s63, 0
    %s66 = sadd.s32 %s65, 1
    %s67 = scalar_select %p64, %s65, %s66
    %p70 = pneg %p64
    %p71 = scmp.eq.s32.totalorder %s8, 1
    %p72 = por %p70, %p71
    %p73 = scmp.ne.s32.totalorder %s65, %s68
    %p74 = scmp.eq.s32.totalorder %s8, 0
    %p75 = por %p73, %p74
    %p76 = scmp.ne.s32.totalorder %s65, %s68
    %p77 = scmp.eq.s32.totalorder %s13, 1
    %p78 = por %p76, %p77
    %p79 = scmp.ne.s32.totalorder %s68, %s69
    %p80 = scmp.eq.s32.totalorder %s13, 0
    %p81 = por %p79, %p80
    %p82 = scmp.ne.s32.totalorder %s68, %s69
    %p83 = scmp.eq.s32.totalorder %s14, 1
    %p84 = por %p82, %p83
    %p86 = scmp.ne.s32.totalorder %s69, %s85
    %p87 = scmp.eq.s32.totalorder %s14, 0
    %p88 = por %p86, %p87
    %p89 = scmp.le.s32.totalorder 1, %s8
    %p90 = scmp.lt.s32.totalorder %s8, 3
    %p91 = pnand %p89, %p90
    %p92 = pneg %p91
    // Predicated region
    $region9: #{graph_base_block_forward.5} parent=5 // pred_check
      _
    $region10: #{graph_base_block_forward.5} parent=5 // pred_check_branch
      %94 = sbr.rel (%p91) target = $region12
    $region11: #{graph_base_block_forward.5} parent=5 // pred_region
      %s95 = ssub.s32 %s8, 1
      // Predicated region
      $region13: #{graph_base_block_forward.5} parent=11 // pred_check
        %p96 = pneg %p55
      $region14: #{graph_base_block_forward.5} parent=11 // pred_check_branch
        %98 = sbr.rel (%p96) target = $region16
      $region15: #{graph_base_block_forward.5} parent=11 // pred_region
        _
      $region16: #{graph_base_block_forward.5} parent=11 // pred_fallthru
        _
    $region12: #{graph_base_block_forward.5} parent=5 // pred_fallthru
      _
    %p99 = scmp.lt.s32.totalorder %s8, 2
    // Predicated region
    $region17: #{graph_base_block_forward.5} parent=5 // pred_check
      %p100 = pneg %p99
    $region18: #{graph_base_block_forward.5} parent=5 // pred_check_branch
      %102 = sbr.rel (%p100) target = $region20
    $region19: #{graph_base_block_forward.5} parent=5 // pred_region
      // Predicated region
      $region21: #{graph_base_block_forward.5} parent=19 // pred_check
        %p103 = pneg %p28
      $region22: #{graph_base_block_forward.5} parent=19 // pred_check_branch
        %105 = sbr.rel (%p103) target = $region24
      $region23: #{graph_base_block_forward.5} parent=19 // pred_region
        %s106 = smul.u32 16, %s8
        %p107 = scmp.lt.s32.totalorder %s106, 31
        %s108 = scalar_select %p107, %s106, 31
        %s109 = smul.addr %s108, 8
        %s110 = scalar_lea.vmem %s0, %s109
        %s111 = smul.u32 16, %s8
      $region24: #{graph_base_block_forward.5} parent=19 // pred_fallthru
        _
    $region20: #{graph_base_block_forward.5} parent=5 // pred_fallthru
      _
    %p112 = scmp.le.s32.totalorder 1, %s8
    %p113 = scmp.lt.s32.totalorder %s8, 3
    %p114 = pnand %p112, %p113
    %p115 = pneg %p114
    // Predicated region
    $region25: #{graph_base_block_forward.5} parent=5 // pred_check
      _
    $region26: #{graph_base_block_forward.5} parent=5 // pred_check_branch
      %117 = sbr.rel (%p114) target = $region28
    $region27: #{graph_base_block_forward.5} parent=5 // pred_region
      %s118 = ssub.s32 %s8, 1
      %s119 = smul.u32 16, %s13
      %p120 = scmp.lt.s32.totalorder %s119, 31
      %s121 = scalar_select %p120, %s119, 31
      %s122 = smul.addr %s121, 8
      %s123 = scalar_lea.vmem %s0, %s122
      %p124 = pneg %p34
      %p125 = pneg %p31
      %p126 = pneg %p55
      %p127 = pneg %p52
      %p128 = pneg %p81
      %p129 = pneg %p78
      %s130 = smul.u32 16, %s13
      %p131 = scmp.lt.s32.totalorder %s130, 31
      %s132 = scalar_select %p131, %s130, 31
      %s133 = smul.addr %s132, 2
      %s134 = smul.addr %s133, 8
      %s135 = scalar_lea.vmem %s2, %s134
      %s136 = smul.u32 16, %s13
      %p137 = scmp.lt.s32.totalorder %s136, 31
      %s138 = scalar_select %p137, %s136, 31
      %s139 = smul.addr %s138, 8
      %s140 = scalar_lea.vmem %s0, %s139
      %s141 = smul.u32 16, %s13
      %s142 = smul.u32 16, %s13
      %p143 = scmp.lt.s32.totalorder %s142, 31
      %s144 = scalar_select %p143, %s142, 31
      %s145 = smul.addr %s144, 2
      %s146 = smul.addr %s145, 8
      %s147 = scalar_lea.vmem %s2, %s146
      %s148 = smul.u32 16, %s13
      %v149 = vld [vmem:[%s140] sm:$0xff]
      %v150 = vld [vmem:[%s140 + $0x8] sm:$0xff]
      %v151 = vld [vmem:[%s140 + $0x10] sm:$0xff]
      %v152 = vld [vmem:[%s140 + $0x18] sm:$0xff]
      %v153 = vld [vmem:[%s140 + $0x20] sm:$0xff]
      %v154 = vld [vmem:[%s140 + $0x28] sm:$0xff]
      %v155 = vld [vmem:[%s140 + $0x30] sm:$0xff]
      %v156 = vld [vmem:[%s140 + $0x38] sm:$0xff]
      %v157 = vld [vmem:[%s140 + $0x40] sm:$0xff]
      %v158 = vld [vmem:[%s140 + $0x48] sm:$0xff]
      %v159 = vld [vmem:[%s140 + $0x50] sm:$0xff]
      %v160 = vld [vmem:[%s140 + $0x58] sm:$0xff]
      %v161 = vld [vmem:[%s140 + $0x60] sm:$0xff]
      %v162 = vld [vmem:[%s140 + $0x68] sm:$0xff]
      %v163 = vld [vmem:[%s140 + $0x70] sm:$0xff]
      %v164 = vld [vmem:[%s140 + $0x78] sm:$0xff]
      %v165 = vld [vmem:[%s1] sm:$0xff]
      %v166 = vld [vmem:[%s1 + $0x8] sm:$0xff]
      %v167 = vld [vmem:[%s1 + $0x10] sm:$0xff]
      %v168 = vld [vmem:[%s1 + $0x18] sm:$0xff]
      %v169 = vld [vmem:[%s1 + $0x20] sm:$0xff]
      %v170 = vld [vmem:[%s1 + $0x28] sm:$0xff]
      %v171 = vld [vmem:[%s1 + $0x30] sm:$0xff]
      %v172 = vld [vmem:[%s1 + $0x38] sm:$0xff]
      %v173 = vld [vmem:[%s1 + $0x40] sm:$0xff]
      %v174 = vld [vmem:[%s1 + $0x48] sm:$0xff]
      %v175 = vld [vmem:[%s1 + $0x50] sm:$0xff]
      %v176 = vld [vmem:[%s1 + $0x58] sm:$0xff]
      %v177 = vld [vmem:[%s1 + $0x60] sm:$0xff]
      %v178 = vld [vmem:[%s1 + $0x68] sm:$0xff]
      %v179 = vld [vmem:[%s1 + $0x70] sm:$0xff]
      %v180 = vld [vmem:[%s1 + $0x78] sm:$0xff]
      %vm181 = vcmask 523264
      %v183 = vsel %vm181, %v149, 0
      %v186 = vsel %vm181, %v150, 0
      %v189 = vsel %vm181, %v151, 0
      %v192 = vsel %vm181, %v152, 0
      %v195 = vsel %vm181, %v153, 0
      %v198 = vsel %vm181, %v154, 0
      %v201 = vsel %vm181, %v155, 0
      %v204 = vsel %vm181, %v156, 0
      %v207 = vsel %vm181, %v157, 0
      %v210 = vsel %vm181, %v158, 0
      %v213 = vsel %vm181, %v159, 0
      %v216 = vsel %vm181, %v160, 0
      %v219 = vsel %vm181, %v161, 0
      %v222 = vsel %vm181, %v162, 0
      %v225 = vsel %vm181, %v163, 0
      %v228 = vsel %vm181, %v164, 0
      %230 = vmatprep.subr.mxu0 %v166
      %231 = vmatpush1.msra.mxu0 %v165
      %232 = vmatprep.subr.mxu0 %v168
      %233 = vmatpush1.msra.mxu0 %v167
      %234 = vmatprep.subr.mxu0 %v170
      %235 = vmatpush1.msra.mxu0 %v169
      %236 = vmatprep.subr.mxu0 %v172
      %237 = vmatpush1.msra.mxu0 %v171
      %238 = vmatprep.subr.mxu0 %v174
      %239 = vmatpush1.msra.mxu0 %v173
      %240 = vmatprep.subr.mxu0 %v176
      %241 = vmatpush1.msra.mxu0 %v175
      %242 = vmatprep.subr.mxu0 %v178
      %243 = vmatpush1.msra.mxu0 %v177
      %244 = vmatprep.subr.mxu0 %v180
      %245 = vmatpush1.msra.mxu0 %v179
      %246 = vmatprep.subr.mxu0 0.0
      %247 = vmatpush1.msra.mxu0 0.0
      %248 = vmatprep.subr.mxu0 0.0
      %249 = vmatpush1.msra.mxu0 0.0
      %250 = vmatprep.subr.mxu0 0.0
      %251 = vmatpush1.msra.mxu0 0.0
      %252 = vmatprep.subr.mxu0 0.0
      %253 = vmatpush1.msra.mxu0 0.0
      %254 = vmatprep.subr.mxu0 0.0
      %255 = vmatpush1.msra.mxu0 0.0
      %256 = vmatprep.subr.mxu0 0.0
      %257 = vmatpush1.msra.mxu0 0.0
      %258 = vmatprep.subr.mxu0 0.0
      %259 = vmatpush1.msra.mxu0 0.0
      %260 = vmatprep.subr.mxu0 0.0
      %261 = vmatpush1.msra.mxu0 0.0
      %262 = vmatprep.subr.mxu0 0.0
      %263 = vmatpush1.msra.mxu0 0.0
      %264 = vmatprep.subr.mxu0 0.0
      %265 = vmatpush1.msra.mxu0 0.0
      %266 = vmatprep.subr.mxu0 0.0
      %267 = vmatpush1.msra.mxu0 0.0
      %268 = vmatprep.subr.mxu0 0.0
      %269 = vmatpush1.msra.mxu0 0.0
      %270 = vmatprep.subr.mxu0 0.0
      %271 = vmatpush1.msra.mxu0 0.0
      %272 = vmatprep.subr.mxu0 0.0
      %273 = vmatpush1.msra.mxu0 0.0
      %274 = vmatprep.subr.mxu0 0.0
      %275 = vmatpush1.msra.mxu0 0.0
      %276 = vmatprep.subr.mxu0 0.0
      %277 = vmatpush1.msra.mxu0 0.0
      %278 = vmatprep.subr.mxu0 0.0
      %279 = vmatpush1.msra.mxu0 0.0
      %280 = vmatprep.subr.mxu0 0.0
      %281 = vmatpush1.msra.mxu0 0.0
      %282 = vmatprep.subr.mxu0 0.0
      %283 = vmatpush1.msra.mxu0 0.0
      %284 = vmatprep.subr.mxu0 0.0
      %285 = vmatpush1.msra.mxu0 0.0
      %286 = vmatprep.subr.mxu0 0.0
      %287 = vmatpush1.msra.mxu0 0.0
      %288 = vmatprep.subr.mxu0 0.0
      %289 = vmatpush1.msra.mxu0 0.0
      %290 = vmatprep.subr.mxu0 0.0
      %291 = vmatpush1.msra.mxu0 0.0
      %292 = vmatprep.subr.mxu0 0.0
      %293 = vmatpush1.msra.mxu0 0.0
      %294 = vmatprep.mubr.f32.mxu0 0.0
      %295 = vmatmul.mubr.f32.gmra.mrb[0].mxu0 %v183
      %v296 = vpop.f32.mrb[0].mxu0
      %v297 = vadd.f32 0.0, %v296
      %v298 = vpop.f32.mrb[0].mxu0
      %v299 = vadd.f32 0.0, %v298
      %300 = vmatprep.mubr.f32.mxu0 0.0
      %301 = vmatmul.mubr.f32.gmra.mrb[0].mxu0 %v186
      %v302 = vpop.f32.mrb[0].mxu0
      %v303 = vadd.f32 0.0, %v302
      %v304 = vpop.f32.mrb[0].mxu0
      %v305 = vadd.f32 0.0, %v304
      %306 = vmatprep.mubr.f32.mxu0 0.0
      %307 = vmatmul.mubr.f32.gmra.mrb[0].mxu0 %v189
      %v308 = vpop.f32.mrb[0].mxu0
      %v309 = vadd.f32 0.0, %v308
      %v310 = vpop.f32.mrb[0].mxu0
      %v311 = vadd.f32 0.0, %v310
      %312 = vmatprep.mubr.f32.mxu0 0.0
      %313 = vmatmul.mubr.f32.gmra.mrb[0].mxu0 %v192
      %v314 = vpop.f32.mrb[0].mxu0
      %v315 = vadd.f32 0.0, %v314
      %v316 = vpop.f32.mrb[0].mxu0
      %v317 = vadd.f32 0.0, %v316
      %318 = vmatprep.mubr.f32.mxu0 0.0
      %319 = vmatmul.mubr.f32.gmra.mrb[0].mxu0 %v195
      %v320 = vpop.f32.mrb[0].mxu0
      %v321 = vadd.f32 0.0, %v320
      %v322 = vpop.f32.mrb[0].mxu0
      %v323 = vadd.f32 0.0, %v322
      %324 = vmatprep.mubr.f32.mxu0 0.0
      %325 = vmatmul.mubr.f32.gmra.mrb[0].mxu0 %v198
      %v326 = vpop.f32.mrb[0].mxu0
      %v327 = vadd.f32 0.0, %v326
      %v328 = vpop.f32.mrb[0].mxu0
      %v329 = vadd.f32 0.0, %v328
      %330 = vmatprep.mubr.f32.mxu0 0.0
      %331 = vmatmul.mubr.f32.gmra.mrb[0].mxu0 %v201
      %v332 = vpop.f32.mrb[0].mxu0
      %v333 = vadd.f32 0.0, %v332
      %v334 = vpop.f32.mrb[0].mxu0
      %v335 = vadd.f32 0.0, %v334
      %336 = vmatprep.mubr.f32.mxu0 0.0
      %337 = vmatmul.mubr.f32.gmra.mrb[0].mxu0 %v204
      %v338 = vpop.f32.mrb[0].mxu0
      %v339 = vadd.f32 0.0, %v338
      %v340 = vpop.f32.mrb[0].mxu0
      %v341 = vadd.f32 0.0, %v340
      %342 = vmatprep.mubr.f32.mxu0 0.0
      %343 = vmatmul.mubr.f32.gmra.mrb[0].mxu0 %v207
      %v344 = vpop.f32.mrb[0].mxu0
      %v345 = vadd.f32 0.0, %v344
      %v346 = vpop.f32.mrb[0].mxu0
      %v347 = vadd.f32 0.0, %v346
      %348 = vmatprep.mubr.f32.mxu0 0.0
      %349 = vmatmul.mubr.f32.gmra.mrb[0].mxu0 %v210
      %v350 = vpop.f32.mrb[0].mxu0
      %v351 = vadd.f32 0.0, %v350
      %v352 = vpop.f32.mrb[0].mxu0
      %v353 = vadd.f32 0.0, %v352
      %354 = vmatprep.mubr.f32.mxu0 0.0
      %355 = vmatmul.mubr.f32.gmra.mrb[0].mxu0 %v213
      %v356 = vpop.f32.mrb[0].mxu0
      %v357 = vadd.f32 0.0, %v356
      %v358 = vpop.f32.mrb[0].mxu0
      %v359 = vadd.f32 0.0, %v358
      %360 = vmatprep.mubr.f32.mxu0 0.0
      %361 = vmatmul.mubr.f32.gmra.mrb[0].mxu0 %v216
      %v362 = vpop.f32.mrb[0].mxu0
      %v363 = vadd.f32 0.0, %v362
      %v364 = vpop.f32.mrb[0].mxu0
      %v365 = vadd.f32 0.0, %v364
      %366 = vmatprep.mubr.f32.mxu0 0.0
      %367 = vmatmul.mubr.f32.gmra.mrb[0].mxu0 %v219
      %v368 = vpop.f32.mrb[0].mxu0
      %v369 = vadd.f32 0.0, %v368
      %v370 = vpop.f32.mrb[0].mxu0
      %v371 = vadd.f32 0.0, %v370
      %372 = vmatprep.mubr.f32.mxu0 0.0
      %373 = vmatmul.mubr.f32.gmra.mrb[0].mxu0 %v222
      %v374 = vpop.f32.mrb[0].mxu0
      %v375 = vadd.f32 0.0, %v374
      %v376 = vpop.f32.mrb[0].mxu0
      %v377 = vadd.f32 0.0, %v376
      %378 = vmatprep.mubr.f32.mxu0 0.0
      %379 = vmatmul.mubr.f32.gmra.mrb[0].mxu0 %v225
      %v380 = vpop.f32.mrb[0].mxu0
      %v381 = vadd.f32 0.0, %v380
      %v382 = vpop.f32.mrb[0].mxu0
      %v383 = vadd.f32 0.0, %v382
      %384 = vmatprep.mubr.f32.mxu0 0.0
      %385 = vmatmul.mubr.f32.gmra.mrb[0].mxu0 %v228
      %v386 = vpop.f32.mrb[0].mxu0
      %v387 = vadd.f32 0.0, %v386
      %v388 = vpop.f32.mrb[0].mxu0
      %v389 = vadd.f32 0.0, %v388
      %390 = vdwg.mxu0
      %391 = vst [vmem:[%s147] sm:$0xff] %v297
      %392 = vst [vmem:[%s147 + $0x8] sm:$0xff] %v299
      %393 = vst [vmem:[%s147 + $0x10] sm:$0xff] %v303
      %394 = vst [vmem:[%s147 + $0x18] sm:$0xff] %v305
      %395 = vst [vmem:[%s147 + $0x20] sm:$0xff] %v309
      %396 = vst [vmem:[%s147 + $0x28] sm:$0xff] %v311
      %397 = vst [vmem:[%s147 + $0x30] sm:$0xff] %v315
      %398 = vst [vmem:[%s147 + $0x38] sm:$0xff] %v317
      %399 = vst [vmem:[%s147 + $0x40] sm:$0xff] %v321
      %400 = vst [vmem:[%s147 + $0x48] sm:$0xff] %v323
      %401 = vst [vmem:[%s147 + $0x50] sm:$0xff] %v327
      %402 = vst [vmem:[%s147 + $0x58] sm:$0xff] %v329
      %403 = vst [vmem:[%s147 + $0x60] sm:$0xff] %v333
      %404 = vst [vmem:[%s147 + $0x68] sm:$0xff] %v335
      %405 = vst [vmem:[%s147 + $0x70] sm:$0xff] %v339
      %406 = vst [vmem:[%s147 + $0x78] sm:$0xff] %v341
      %407 = vst [vmem:[%s147 + $0x80] sm:$0xff] %v345
      %408 = vst [vmem:[%s147 + $0x88] sm:$0xff] %v347
      %409 = vst [vmem:[%s147 + $0x90] sm:$0xff] %v351
      %410 = vst [vmem:[%s147 + $0x98] sm:$0xff] %v353
      %411 = vst [vmem:[%s147 + $0xa0] sm:$0xff] %v357
      %412 = vst [vmem:[%s147 + $0xa8] sm:$0xff] %v359
      %413 = vst [vmem:[%s147 + $0xb0] sm:$0xff] %v363
      %414 = vst [vmem:[%s147 + $0xb8] sm:$0xff] %v365
      %415 = vst [vmem:[%s147 + $0xc0] sm:$0xff] %v369
      %416 = vst [vmem:[%s147 + $0xc8] sm:$0xff] %v371
      %417 = vst [vmem:[%s147 + $0xd0] sm:$0xff] %v375
      %418 = vst [vmem:[%s147 + $0xd8] sm:$0xff] %v377
      %419 = vst [vmem:[%s147 + $0xe0] sm:$0xff] %v381
      %420 = vst [vmem:[%s147 + $0xe8] sm:$0xff] %v383
      %421 = vst [vmem:[%s147 + $0xf0] sm:$0xff] %v387
      %422 = vst [vmem:[%s147 + $0xf8] sm:$0xff] %v389
      %s423 = smul.u32 16, %s13
      %p424 = scmp.lt.s32.totalorder %s423, 31
      %s425 = scalar_select %p424, %s423, 31
      %s426 = smul.addr %s425, 2
      %s427 = smul.addr %s426, 8
      %s428 = scalar_lea.vmem %s2, %s427
      // Predicated region
      $region29: #{graph_base_block_forward.5} parent=27 // pred_check
        %p429 = pneg %p78
      $region30: #{graph_base_block_forward.5} parent=27 // pred_check_branch
        %431 = sbr.rel (%p429) target = $region32
      $region31: #{graph_base_block_forward.5} parent=27 // pred_region
        %s432 = smul.u32 16, %s13
      $region32: #{graph_base_block_forward.5} parent=27 // pred_fallthru
        _
    $region28: #{graph_base_block_forward.5} parent=5 // pred_fallthru
      _
    %p433 = scmp.le.s32.totalorder 2, %s8
    // Predicated region
    $region33: #{graph_base_block_forward.5} parent=5 // pred_check
      %p434 = pneg %p433
    $region34: #{graph_base_block_forward.5} parent=5 // pred_check_branch
      %436 = sbr.rel (%p434) target = $region36
    $region35: #{graph_base_block_forward.5} parent=5 // pred_region
      %s437 = ssub.s32 %s8, 2
      // Predicated region
      $region37: #{graph_base_block_forward.5} parent=35 // pred_check
        %p438 = pneg %p84
      $region38: #{graph_base_block_forward.5} parent=35 // pred_check_branch
        %440 = sbr.rel (%p438) target = $region40
      $region39: #{graph_base_block_forward.5} parent=35 // pred_region
        %s441 = smul.u32 16, %s14
        %p442 = scmp.lt.s32.totalorder %s441, 31
        %s443 = scalar_select %p442, %s441, 31
        %s444 = smul.addr %s443, 2
        %s445 = smul.addr %s444, 8
        %s446 = scalar_lea.vmem %s2, %s445
      $region40: #{graph_base_block_forward.5} parent=35 // pred_fallthru
        _
    $region36: #{graph_base_block_forward.5} parent=5 // pred_fallthru
      _
  $region6: #{graph_base_block_forward.5} parent=0 // loop_footer
    %s12 = sadd.s32 1, %s8
  $region7: #{graph_base_block_forward.5} parent=0 // loop_footer_branch
    %7 = sbr.rel target = $region3
  $region8: #{graph_base_block_forward.5} parent=0 // loop_exit
    _

// kernel: graph_base_block_forward.7
$region0: #{graph_base_block_forward.7}
  #allocation0 [shape = 'u32[]', space=smem, size = 0x4, offset = 0x4, fixed_abs, tag = 'smem constant byte address 0x4 - core index']
  #allocation1 [shape = 'u32[144,128]{1,0:T(1,128)}', space=vmem, size = 0x12000, scoped, tag = 'internal scratch']
  %s0 = inlined_call_operand.vmem [shape: f32[256,128], index: 0, kind: input, shape index: {}]
  %s1 = inlined_call_operand.vmem [shape: f32[128,256], index: 1, kind: input, shape index: {}]
  %s2 = inlined_call_operand.vmem [shape: f32[256,256], index: 2, kind: output, shape index: {}]
  %s3 = sld [smem:[#allocation0]]
  $region41: #{graph_base_block_forward.7} parent=0
    _
  %s5 = ssub.s32 1, %s3
  %s6 = scalar_select 0, %s5, %s3
  loop: start=0, step=1, limit=4
  $region2: #{graph_base_block_forward.7} parent=0 // loop_pre_header
    _
  $region3: #{graph_base_block_forward.7} parent=0 // loop_header
    %s8 = sphi 0, %s12
    %p9 = scmp.ge.s32.totalorder %s8, 4
    %s18 = sphi 0, %s20
    %s21 = sphi 0, %s18
    %s22 = sphi 0, %s21
    %s38 = sphi 0, %s22
    %s42 = sphi 0, %s42
    %s44 = sphi 0, %s42
    %s45 = sphi 0, %s44
    %s59 = sphi 0, %s45
    %s65 = sphi 0, %s67
    %s68 = sphi 0, %s65
    %s69 = sphi 0, %s68
    %s85 = sphi 0, %s69
  $region4: #{graph_base_block_forward.7} parent=0 // loop_header_branch
    %11 = sbr.rel (%p9) target = $region8
  $region5: #{graph_base_block_forward.7} parent=0 // loop_body
    %s13 = ssub.s32 %s8, 1
    %s14 = ssub.s32 %s8, 2
    %s15 = sadd.s32 %s8, 1
    %s16 = ssub.s32 %s8, %s15
    %p17 = scmp.eq.s32.totalorder %s16, 0
    %s19 = sadd.s32 %s18, 1
    %s20 = scalar_select %p17, %s18, %s19
    %p23 = pneg %p17
    %p24 = scmp.eq.s32.totalorder %s8, 1
    %p25 = por %p23, %p24
    %p26 = scmp.ne.s32.totalorder %s18, %s21
    %p27 = scmp.eq.s32.totalorder %s8, 0
    %p28 = por %p26, %p27
    %p29 = scmp.ne.s32.totalorder %s18, %s21
    %p30 = scmp.eq.s32.totalorder %s13, 1
    %p31 = por %p29, %p30
    %p32 = scmp.ne.s32.totalorder %s21, %s22
    %p33 = scmp.eq.s32.totalorder %s13, 0
    %p34 = por %p32, %p33
    %p35 = scmp.ne.s32.totalorder %s21, %s22
    %p36 = scmp.eq.s32.totalorder %s14, 1
    %p37 = por %p35, %p36
    %p39 = scmp.ne.s32.totalorder %s22, %s38
    %p40 = scmp.eq.s32.totalorder %s14, 0
    %p41 = por %p39, %p40
    %s43 = sadd.s32 %s42, 1
    %p46 = scmp.eq.s32.totalorder %s8, 1
    %p47 = scmp.ne.s32.totalorder %s42, %s44
    %p48 = scmp.eq.s32.totalorder %s8, 0
    %p49 = por %p47, %p48
    %p50 = scmp.ne.s32.totalorder %s42, %s44
    %p51 = scmp.eq.s32.totalorder %s13, 1
    %p52 = por %p50, %p51
    %p53 = scmp.ne.s32.totalorder %s44, %s45
    %p54 = scmp.eq.s32.totalorder %s13, 0
    %p55 = por %p53, %p54
    %p56 = scmp.ne.s32.totalorder %s44, %s45
    %p57 = scmp.eq.s32.totalorder %s14, 1
    %p58 = por %p56, %p57
    %p60 = scmp.ne.s32.totalorder %s45, %s59
    %p61 = scmp.eq.s32.totalorder %s14, 0
    %p62 = por %p60, %p61
    %s63 = ssub.s32 %s8, %s15
    %p64 = scmp.eq.s32.totalorder %s63, 0
    %s66 = sadd.s32 %s65, 1
    %s67 = scalar_select %p64, %s65, %s66
    %p70 = pneg %p64
    %p71 = scmp.eq.s32.totalorder %s8, 1
    %p72 = por %p70, %p71
    %p73 = scmp.ne.s32.totalorder %s65, %s68
    %p74 = scmp.eq.s32.totalorder %s8, 0
    %p75 = por %p73, %p74
    %p76 = scmp.ne.s32.totalorder %s65, %s68
    %p77 = scmp.eq.s32.totalorder %s13, 1
    %p78 = por %p76, %p77
    %p79 = scmp.ne.s32.totalorder %s68, %s69
    %p80 = scmp.eq.s32.totalorder %s13, 0
    %p81 = por %p79, %p80
    %p82 = scmp.ne.s32.totalorder %s68, %s69
    %p83 = scmp.eq.s32.totalorder %s14, 1
    %p84 = por %p82, %p83
    %p86 = scmp.ne.s32.totalorder %s69, %s85
    %p87 = scmp.eq.s32.totalorder %s14, 0
    %p88 = por %p86, %p87
    %p89 = scmp.le.s32.totalorder 1, %s8
    %p90 = scmp.lt.s32.totalorder %s8, 3
    %p91 = pnand %p89, %p90
    %p92 = pneg %p91
    // Predicated region
    $region9: #{graph_base_block_forward.7} parent=5 // pred_check
      _
    $region10: #{graph_base_block_forward.7} parent=5 // pred_check_branch
      %94 = sbr.rel (%p91) target = $region12
    $region11: #{graph_base_block_forward.7} parent=5 // pred_region
      %s95 = ssub.s32 %s8, 1
      // Predicated region
      $region13: #{graph_base_block_forward.7} parent=11 // pred_check
        %p96 = pneg %p55
      $region14: #{graph_base_block_forward.7} parent=11 // pred_check_branch
        %98 = sbr.rel (%p96) target = $region16
      $region15: #{graph_base_block_forward.7} parent=11 // pred_region
        _
      $region16: #{graph_base_block_forward.7} parent=11 // pred_fallthru
        _
    $region12: #{graph_base_block_forward.7} parent=5 // pred_fallthru
      _
    %p99 = scmp.lt.s32.totalorder %s8, 2
    // Predicated region
    $region17: #{graph_base_block_forward.7} parent=5 // pred_check
      %p100 = pneg %p99
    $region18: #{graph_base_block_forward.7} parent=5 // pred_check_branch
      %102 = sbr.rel (%p100) target = $region20
    $region19: #{graph_base_block_forward.7} parent=5 // pred_region
      // Predicated region
      $region21: #{graph_base_block_forward.7} parent=19 // pred_check
        %p103 = pneg %p28
      $region22: #{graph_base_block_forward.7} parent=19 // pred_check_branch
        %105 = sbr.rel (%p103) target = $region24
      $region23: #{graph_base_block_forward.7} parent=19 // pred_region
        %s106 = smul.u32 16, %s8
        %p107 = scmp.lt.s32.totalorder %s106, 31
        %s108 = scalar_select %p107, %s106, 31
        %s109 = smul.addr %s108, 8
        %s110 = scalar_lea.vmem %s0, %s109
        %s111 = smul.u32 16, %s8
      $region24: #{graph_base_block_forward.7} parent=19 // pred_fallthru
        _
    $region20: #{graph_base_block_forward.7} parent=5 // pred_fallthru
      _
    %p112 = scmp.le.s32.totalorder 1, %s8
    %p113 = scmp.lt.s32.totalorder %s8, 3
    %p114 = pnand %p112, %p113
    %p115 = pneg %p114
    // Predicated region
    $region25: #{graph_base_block_forward.7} parent=5 // pred_check
      _
    $region26: #{graph_base_block_forward.7} parent=5 // pred_check_branch
      %117 = sbr.rel (%p114) target = $region28
    $region27: #{graph_base_block_forward.7} parent=5 // pred_region
      %s118 = ssub.s32 %s8, 1
      %s119 = smul.u32 16, %s13
      %p120 = scmp.lt.s32.totalorder %s119, 31
      %s121 = scalar_select %p120, %s119, 31
      %s122 = smul.addr %s121, 8
      %s123 = scalar_lea.vmem %s0, %s122
      %p124 = pneg %p34
      %p125 = pneg %p31
      %p126 = pneg %p55
      %p127 = pneg %p52
      %p128 = pneg %p81
      %p129 = pneg %p78
      %s130 = smul.u32 16, %s13
      %p131 = scmp.lt.s32.totalorder %s130, 31
      %s132 = scalar_select %p131, %s130, 31
      %s133 = smul.addr %s132, 2
      %s134 = smul.addr %s133, 8
      %s135 = scalar_lea.vmem %s2, %s134
      %s136 = smul.u32 16, %s13
      %p137 = scmp.lt.s32.totalorder %s136, 31
      %s138 = scalar_select %p137, %s136, 31
      %s139 = smul.addr %s138, 8
      %s140 = scalar_lea.vmem %s0, %s139
      %s141 = smul.u32 16, %s13
      %s142 = smul.u32 16, %s13
      %p143 = scmp.lt.s32.totalorder %s142, 31
      %s144 = scalar_select %p143, %s142, 31
      %s145 = smul.addr %s144, 2
      %s146 = smul.addr %s145, 8
      %s147 = scalar_lea.vmem %s2, %s146
      %s148 = smul.u32 16, %s13
      %v149 = vld [vmem:[%s140] sm:$0xff]
      %v150 = vld [vmem:[%s140 + $0x8] sm:$0xff]
      %v151 = vld [vmem:[%s140 + $0x10] sm:$0xff]
      %v152 = vld [vmem:[%s140 + $0x18] sm:$0xff]
      %v153 = vld [vmem:[%s140 + $0x20] sm:$0xff]
      %v154 = vld [vmem:[%s140 + $0x28] sm:$0xff]
      %v155 = vld [vmem:[%s140 + $0x30] sm:$0xff]
      %v156 = vld [vmem:[%s140 + $0x38] sm:$0xff]
      %v157 = vld [vmem:[%s140 + $0x40] sm:$0xff]
      %v158 = vld [vmem:[%s140 + $0x48] sm:$0xff]
      %v159 = vld [vmem:[%s140 + $0x50] sm:$0xff]
      %v160 = vld [vmem:[%s140 + $0x58] sm:$0xff]
      %v161 = vld [vmem:[%s140 + $0x60] sm:$0xff]
      %v162 = vld [vmem:[%s140 + $0x68] sm:$0xff]
      %v163 = vld [vmem:[%s140 + $0x70] sm:$0xff]
      %v164 = vld [vmem:[%s140 + $0x78] sm:$0xff]
      %v165 = vld [vmem:[%s1] sm:$0xff]
      %v166 = vld [vmem:[%s1 + $0x8] sm:$0xff]
      %v167 = vld [vmem:[%s1 + $0x10] sm:$0xff]
      %v168 = vld [vmem:[%s1 + $0x18] sm:$0xff]
      %v169 = vld [vmem:[%s1 + $0x20] sm:$0xff]
      %v170 = vld [vmem:[%s1 + $0x28] sm:$0xff]
      %v171 = vld [vmem:[%s1 + $0x30] sm:$0xff]
      %v172 = vld [vmem:[%s1 + $0x38] sm:$0xff]
      %v173 = vld [vmem:[%s1 + $0x40] sm:$0xff]
      %v174 = vld [vmem:[%s1 + $0x48] sm:$0xff]
      %v175 = vld [vmem:[%s1 + $0x50] sm:$0xff]
      %v176 = vld [vmem:[%s1 + $0x58] sm:$0xff]
      %v177 = vld [vmem:[%s1 + $0x60] sm:$0xff]
      %v178 = vld [vmem:[%s1 + $0x68] sm:$0xff]
      %v179 = vld [vmem:[%s1 + $0x70] sm:$0xff]
      %v180 = vld [vmem:[%s1 + $0x78] sm:$0xff]
      %v181 = vld [vmem:[%s1 + $0x80] sm:$0xff]
      %v182 = vld [vmem:[%s1 + $0x88] sm:$0xff]
      %v183 = vld [vmem:[%s1 + $0x90] sm:$0xff]
      %v184 = vld [vmem:[%s1 + $0x98] sm:$0xff]
      %v185 = vld [vmem:[%s1 + $0xa0] sm:$0xff]
      %v186 = vld [vmem:[%s1 + $0xa8] sm:$0xff]
      %v187 = vld [vmem:[%s1 + $0xb0] sm:$0xff]
      %v188 = vld [vmem:[%s1 + $0xb8] sm:$0xff]
      %v189 = vld [vmem:[%s1 + $0xc0] sm:$0xff]
      %v190 = vld [vmem:[%s1 + $0xc8] sm:$0xff]
      %v191 = vld [vmem:[%s1 + $0xd0] sm:$0xff]
      %v192 = vld [vmem:[%s1 + $0xd8] sm:$0xff]
      %v193 = vld [vmem:[%s1 + $0xe0] sm:$0xff]
      %v194 = vld [vmem:[%s1 + $0xe8] sm:$0xff]
      %v195 = vld [vmem:[%s1 + $0xf0] sm:$0xff]
      %v196 = vld [vmem:[%s1 + $0xf8] sm:$0xff]
      %197 = vmatprep.subr.mxu0 %v166
      %198 = vmatpush1.msra.mxu0 %v165
      %199 = vmatprep.subr.mxu0 %v168
      %200 = vmatpush1.msra.mxu0 %v167
      %201 = vmatprep.subr.mxu0 %v170
      %202 = vmatpush1.msra.mxu0 %v169
      %203 = vmatprep.subr.mxu0 %v172
      %204 = vmatpush1.msra.mxu0 %v171
      %205 = vmatprep.subr.mxu0 %v174
      %206 = vmatpush1.msra.mxu0 %v173
      %207 = vmatprep.subr.mxu0 %v176
      %208 = vmatpush1.msra.mxu0 %v175
      %209 = vmatprep.subr.mxu0 %v178
      %210 = vmatpush1.msra.mxu0 %v177
      %211 = vmatprep.subr.mxu0 %v180
      %212 = vmatpush1.msra.mxu0 %v179
      %213 = vmatprep.subr.mxu0 %v182
      %214 = vmatpush1.msra.mxu0 %v181
      %215 = vmatprep.subr.mxu0 %v184
      %216 = vmatpush1.msra.mxu0 %v183
      %217 = vmatprep.subr.mxu0 %v186
      %218 = vmatpush1.msra.mxu0 %v185
      %219 = vmatprep.subr.mxu0 %v188
      %220 = vmatpush1.msra.mxu0 %v187
      %221 = vmatprep.subr.mxu0 %v190
      %222 = vmatpush1.msra.mxu0 %v189
      %223 = vmatprep.subr.mxu0 %v192
      %224 = vmatpush1.msra.mxu0 %v191
      %225 = vmatprep.subr.mxu0 %v194
      %226 = vmatpush1.msra.mxu0 %v193
      %227 = vmatprep.subr.mxu0 %v196
      %228 = vmatpush1.msra.mxu0 %v195
      %229 = vmatprep.subr.mxu0 0.0
      %230 = vmatpush1.msra.mxu0 0.0
      %231 = vmatprep.subr.mxu0 0.0
      %232 = vmatpush1.msra.mxu0 0.0
      %233 = vmatprep.subr.mxu0 0.0
      %234 = vmatpush1.msra.mxu0 0.0
      %235 = vmatprep.subr.mxu0 0.0
      %236 = vmatpush1.msra.mxu0 0.0
      %237 = vmatprep.subr.mxu0 0.0
      %238 = vmatpush1.msra.mxu0 0.0
      %239 = vmatprep.subr.mxu0 0.0
      %240 = vmatpush1.msra.mxu0 0.0
      %241 = vmatprep.subr.mxu0 0.0
      %242 = vmatpush1.msra.mxu0 0.0
      %243 = vmatprep.subr.mxu0 0.0
      %244 = vmatpush1.msra.mxu0 0.0
      %245 = vmatprep.subr.mxu0 0.0
      %246 = vmatpush1.msra.mxu0 0.0
      %247 = vmatprep.subr.mxu0 0.0
      %248 = vmatpush1.msra.mxu0 0.0
      %249 = vmatprep.subr.mxu0 0.0
      %250 = vmatpush1.msra.mxu0 0.0
      %251 = vmatprep.subr.mxu0 0.0
      %252 = vmatpush1.msra.mxu0 0.0
      %253 = vmatprep.subr.mxu0 0.0
      %254 = vmatpush1.msra.mxu0 0.0
      %255 = vmatprep.subr.mxu0 0.0
      %256 = vmatpush1.msra.mxu0 0.0
      %257 = vmatprep.subr.mxu0 0.0
      %258 = vmatpush1.msra.mxu0 0.0
      %259 = vmatprep.subr.mxu0 0.0
      %260 = vmatpush1.msra.mxu0 0.0
      %261 = vmatprep.mubr.f32.mxu0 0.0
      %262 = vmatmul.mubr.f32.gmra.mrb[0].mxu0 %v149
      %v263 = vpop.f32.mrb[0].mxu0
      %v264 = vadd.f32 0.0, %v263
      %v265 = vpop.f32.mrb[0].mxu0
      %v266 = vadd.f32 0.0, %v265
      %267 = vmatprep.mubr.f32.mxu0 0.0
      %268 = vmatmul.mubr.f32.gmra.mrb[0].mxu0 %v150
      %v269 = vpop.f32.mrb[0].mxu0
      %v270 = vadd.f32 0.0, %v269
      %v271 = vpop.f32.mrb[0].mxu0
      %v272 = vadd.f32 0.0, %v271
      %273 = vmatprep.mubr.f32.mxu0 0.0
      %274 = vmatmul.mubr.f32.gmra.mrb[0].mxu0 %v151
      %v275 = vpop.f32.mrb[0].mxu0
      %v276 = vadd.f32 0.0, %v275
      %v277 = vpop.f32.mrb[0].mxu0
      %v278 = vadd.f32 0.0, %v277
      %279 = vmatprep.mubr.f32.mxu0 0.0
      %280 = vmatmul.mubr.f32.gmra.mrb[0].mxu0 %v152
      %v281 = vpop.f32.mrb[0].mxu0
      %v282 = vadd.f32 0.0, %v281
      %v283 = vpop.f32.mrb[0].mxu0
      %v284 = vadd.f32 0.0, %v283
      %285 = vmatprep.mubr.f32.mxu0 0.0
      %286 = vmatmul.mubr.f32.gmra.mrb[0].mxu0 %v153
      %v287 = vpop.f32.mrb[0].mxu0
      %v288 = vadd.f32 0.0, %v287
      %v289 = vpop.f32.mrb[0].mxu0
      %v290 = vadd.f32 0.0, %v289
      %291 = vmatprep.mubr.f32.mxu0 0.0
      %292 = vmatmul.mubr.f32.gmra.mrb[0].mxu0 %v154
      %v293 = vpop.f32.mrb[0].mxu0
      %v294 = vadd.f32 0.0, %v293
      %v295 = vpop.f32.mrb[0].mxu0
      %v296 = vadd.f32 0.0, %v295
      %297 = vmatprep.mubr.f32.mxu0 0.0
      %298 = vmatmul.mubr.f32.gmra.mrb[0].mxu0 %v155
      %v299 = vpop.f32.mrb[0].mxu0
      %v300 = vadd.f32 0.0, %v299
      %v301 = vpop.f32.mrb[0].mxu0
      %v302 = vadd.f32 0.0, %v301
      %303 = vmatprep.mubr.f32.mxu0 0.0
      %304 = vmatmul.mubr.f32.gmra.mrb[0].mxu0 %v156
      %v305 = vpop.f32.mrb[0].mxu0
      %v306 = vadd.f32 0.0, %v305
      %v307 = vpop.f32.mrb[0].mxu0
      %v308 = vadd.f32 0.0, %v307
      %309 = vmatprep.mubr.f32.mxu0 0.0
      %310 = vmatmul.mubr.f32.gmra.mrb[0].mxu0 %v157
      %v311 = vpop.f32.mrb[0].mxu0
      %v312 = vadd.f32 0.0, %v311
      %v313 = vpop.f32.mrb[0].mxu0
      %v314 = vadd.f32 0.0, %v313
      %315 = vmatprep.mubr.f32.mxu0 0.0
      %316 = vmatmul.mubr.f32.gmra.mrb[0].mxu0 %v158
      %v317 = vpop.f32.mrb[0].mxu0
      %v318 = vadd.f32 0.0, %v317
      %v319 = vpop.f32.mrb[0].mxu0
      %v320 = vadd.f32 0.0, %v319
      %321 = vmatprep.mubr.f32.mxu0 0.0
      %322 = vmatmul.mubr.f32.gmra.mrb[0].mxu0 %v159
      %v323 = vpop.f32.mrb[0].mxu0
      %v324 = vadd.f32 0.0, %v323
      %v325 = vpop.f32.mrb[0].mxu0
      %v326 = vadd.f32 0.0, %v325
      %327 = vmatprep.mubr.f32.mxu0 0.0
      %328 = vmatmul.mubr.f32.gmra.mrb[0].mxu0 %v160
      %v329 = vpop.f32.mrb[0].mxu0
      %v330 = vadd.f32 0.0, %v329
      %v331 = vpop.f32.mrb[0].mxu0
      %v332 = vadd.f32 0.0, %v331
      %333 = vmatprep.mubr.f32.mxu0 0.0
      %334 = vmatmul.mubr.f32.gmra.mrb[0].mxu0 %v161
      %v335 = vpop.f32.mrb[0].mxu0
      %v336 = vadd.f32 0.0, %v335
      %v337 = vpop.f32.mrb[0].mxu0
      %v338 = vadd.f32 0.0, %v337
      %339 = vmatprep.mubr.f32.mxu0 0.0
      %340 = vmatmul.mubr.f32.gmra.mrb[0].mxu0 %v162
      %v341 = vpop.f32.mrb[0].mxu0
      %v342 = vadd.f32 0.0, %v341
      %v343 = vpop.f32.mrb[0].mxu0
      %v344 = vadd.f32 0.0, %v343
      %345 = vmatprep.mubr.f32.mxu0 0.0
      %346 = vmatmul.mubr.f32.gmra.mrb[0].mxu0 %v163
      %v347 = vpop.f32.mrb[0].mxu0
      %v348 = vadd.f32 0.0, %v347
      %v349 = vpop.f32.mrb[0].mxu0
      %v350 = vadd.f32 0.0, %v349
      %351 = vmatprep.mubr.f32.mxu0 0.0
      %352 = vmatmul.mubr.f32.gmra.mrb[0].mxu0 %v164
      %v353 = vpop.f32.mrb[0].mxu0
      %v354 = vadd.f32 0.0, %v353
      %v355 = vpop.f32.mrb[0].mxu0
      %v356 = vadd.f32 0.0, %v355
      %357 = vdwg.mxu0
      %358 = vst [vmem:[%s147] sm:$0xff] %v264
      %359 = vst [vmem:[%s147 + $0x8] sm:$0xff] %v266
      %360 = vst [vmem:[%s147 + $0x10] sm:$0xff] %v270
      %361 = vst [vmem:[%s147 + $0x18] sm:$0xff] %v272
      %362 = vst [vmem:[%s147 + $0x20] sm:$0xff] %v276
      %363 = vst [vmem:[%s147 + $0x28] sm:$0xff] %v278
      %364 = vst [vmem:[%s147 + $0x30] sm:$0xff] %v282
      %365 = vst [vmem:[%s147 + $0x38] sm:$0xff] %v284
      %366 = vst [vmem:[%s147 + $0x40] sm:$0xff] %v288
      %367 = vst [vmem:[%s147 + $0x48] sm:$0xff] %v290
      %368 = vst [vmem:[%s147 + $0x50] sm:$0xff] %v294
      %369 = vst [vmem:[%s147 + $0x58] sm:$0xff] %v296
      %370 = vst [vmem:[%s147 + $0x60] sm:$0xff] %v300
      %371 = vst [vmem:[%s147 + $0x68] sm:$0xff] %v302
      %372 = vst [vmem:[%s147 + $0x70] sm:$0xff] %v306
      %373 = vst [vmem:[%s147 + $0x78] sm:$0xff] %v308
      %374 = vst [vmem:[%s147 + $0x80] sm:$0xff] %v312
      %375 = vst [vmem:[%s147 + $0x88] sm:$0xff] %v314
      %376 = vst [vmem:[%s147 + $0x90] sm:$0xff] %v318
      %377 = vst [vmem:[%s147 + $0x98] sm:$0xff] %v320
      %378 = vst [vmem:[%s147 + $0xa0] sm:$0xff] %v324
      %379 = vst [vmem:[%s147 + $0xa8] sm:$0xff] %v326
      %380 = vst [vmem:[%s147 + $0xb0] sm:$0xff] %v330
      %381 = vst [vmem:[%s147 + $0xb8] sm:$0xff] %v332
      %382 = vst [vmem:[%s147 + $0xc0] sm:$0xff] %v336
      %383 = vst [vmem:[%s147 + $0xc8] sm:$0xff] %v338
      %384 = vst [vmem:[%s147 + $0xd0] sm:$0xff] %v342
      %385 = vst [vmem:[%s147 + $0xd8] sm:$0xff] %v344
      %386 = vst [vmem:[%s147 + $0xe0] sm:$0xff] %v348
      %387 = vst [vmem:[%s147 + $0xe8] sm:$0xff] %v350
      %388 = vst [vmem:[%s147 + $0xf0] sm:$0xff] %v354
      %389 = vst [vmem:[%s147 + $0xf8] sm:$0xff] %v356
      %s390 = smul.u32 16, %s13
      %p391 = scmp.lt.s32.totalorder %s390, 31
      %s392 = scalar_select %p391, %s390, 31
      %s393 = smul.addr %s392, 2
      %s394 = smul.addr %s393, 8
      %s395 = scalar_lea.vmem %s2, %s394
      // Predicated region
      $region29: #{graph_base_block_forward.7} parent=27 // pred_check
        %p396 = pneg %p78
      $region30: #{graph_base_block_forward.7} parent=27 // pred_check_branch
        %398 = sbr.rel (%p396) target = $region32
      $region31: #{graph_base_block_forward.7} parent=27 // pred_region
        %s399 = smul.u32 16, %s13
      $region32: #{graph_base_block_forward.7} parent=27 // pred_fallthru
        _
    $region28: #{graph_base_block_forward.7} parent=5 // pred_fallthru
      _
    %p400 = scmp.le.s32.totalorder 2, %s8
    // Predicated region
    $region33: #{graph_base_block_forward.7} parent=5 // pred_check
      %p401 = pneg %p400
    $region34: #{graph_base_block_forward.7} parent=5 // pred_check_branch
      %403 = sbr.rel (%p401) target = $region36
    $region35: #{graph_base_block_forward.7} parent=5 // pred_region
      %s404 = ssub.s32 %s8, 2
      // Predicated region
      $region37: #{graph_base_block_forward.7} parent=35 // pred_check
        %p405 = pneg %p84
      $region38: #{graph_base_block_forward.7} parent=35 // pred_check_branch
        %407 = sbr.rel (%p405) target = $region40
      $region39: #{graph_base_block_forward.7} parent=35 // pred_region
        %s408 = smul.u32 16, %s14
        %p409 = scmp.lt.s32.totalorder %s408, 31
        %s410 = scalar_select %p409, %s408, 31
        %s411 = smul.addr %s410, 2
        %s412 = smul.addr %s411, 8
        %s413 = scalar_lea.vmem %s2, %s412
      $region40: #{graph_base_block_forward.7} parent=35 // pred_fallthru
        _
    $region36: #{graph_base_block_forward.7} parent=5 // pred_fallthru
      _
  $region6: #{graph_base_block_forward.7} parent=0 // loop_footer
    %s12 = sadd.s32 1, %s8
  $region7: #{graph_base_block_forward.7} parent=0 // loop_footer_branch
    %7 = sbr.rel target = $region3
  $region8: #{graph_base_block_forward.7} parent=0 // loop_exit
    _

// kernel: graph_base_block_forward.6
$region0: #{graph_base_block_forward.6}
  #allocation0 [shape = 'u32[]', space=smem, size = 0x4, offset = 0x4, fixed_abs, tag = 'smem constant byte address 0x4 - core index']
  #allocation1 [shape = 'u32[144,128]{1,0:T(1,128)}', space=vmem, size = 0x12000, scoped, tag = 'internal scratch']
  #allocation2 [shape = 'f32[128,128]{1,0:T(8,128)}', space=vmem, size = 0x10000, scoped, tag = 'scratch operand']
  %s0 = inlined_call_operand.vmem [shape: f32[256,256], index: 0, kind: input, shape index: {}]
  %s1 = inlined_call_operand.vmem [shape: f32[256,256], index: 1, kind: input, shape index: {}, may-alias: {1,2}]
  %s2 = inlined_call_operand.vmem [shape: f32[256,256], index: 2, kind: input, shape index: {}, may-alias: {1,2}]
  %s3 = inlined_call_operand.vmem [shape: f32[1,128], index: 3, kind: input, shape index: {}]
  %s4 = inlined_call_operand.vmem [shape: f32[1,128], index: 4, kind: input, shape index: {}]
  %s5 = inlined_call_operand.vmem [shape: f32[256,128], index: 5, kind: output, shape index: {}]
  %s6 = sld [smem:[#allocation0]]
  $region175: #{graph_base_block_forward.6} parent=0
    _
  %s8 = ssub.s32 1, %s6
  %s9 = scalar_select 0, %s8, %s6
  $region1: #{graph_base_block_forward.6} parent=0
    #allocation3 [shape = 'u8[131072]{0}', space=vmem, size = 0x20000, scoped, tag = 'input window, operand 0']
    #allocation4 [shape = 'u8[131072]{0}', space=vmem, size = 0x20000, scoped, tag = 'input window, operand 1, single buffered']
    #allocation5 [shape = 'u8[131072]{0}', space=vmem, size = 0x20000, scoped, tag = 'input window, operand 2']
    loop: start=0, step=1, limit=6
    $region2: #{graph_base_block_forward.6} parent=1 // loop_pre_header
      _
    $region3: #{graph_base_block_forward.6} parent=1 // loop_header
      %s11 = sphi 0, %s15
      %p12 = scmp.ge.s32.totalorder %s11, 6
      %s18 = sphi 0, %s30
      %s19 = sphi 0, %s26
      %s20 = sphi 0, %s18
      %s21 = sphi 0, %s19
      %s22 = sphi 0, %s20
      %s23 = sphi 0, %s21
      %s35 = sphi 0, %s37
      %s38 = sphi 0, %s35
      %s39 = sphi 0, %s38
      %s55 = sphi 0, %s39
      %s59 = sphi 0, %s59
      %s61 = sphi 0, %s59
      %s62 = sphi 0, %s61
      %s76 = sphi 0, %s62
      %s82 = sphi 0, %s84
      %s85 = sphi 0, %s82
      %s86 = sphi 0, %s85
      %s102 = sphi 0, %s86
      %s106 = sphi 0, %s106
      %s108 = sphi 0, %s106
      %s109 = sphi 0, %s108
      %s123 = sphi 0, %s109
      %s127 = sphi 0, %s127
      %s129 = sphi 0, %s127
      %s130 = sphi 0, %s129
      %s144 = sphi 0, %s130
      %s150 = sphi 0, %s152
      %s153 = sphi 0, %s150
      %s154 = sphi 0, %s153
      %s170 = sphi 0, %s154
    $region4: #{graph_base_block_forward.6} parent=1 // loop_header_branch
      %14 = sbr.rel (%p12) target = $region8
    $region5: #{graph_base_block_forward.6} parent=1 // loop_body
      %s16 = ssub.s32 %s11, 1
      %s17 = ssub.s32 %s11, 2
      %s24 = sadd.s32 1, %s19
      %p25 = scmp.ge.s32.totalorder %s24, 2
      %s26 = scalar_select %p25, 0, %s24
      %s27 = sadd.s32 1, %s18
      %s28 = scalar_select %p25, %s27, %s18
      %p29 = scmp.ge.s32.totalorder %s28, 2
      %s30 = scalar_select %p29, 0, %s28
      %s31 = ssub.s32 %s18, %s30
      %s32 = ssub.s32 %s19, %s26
      %s33 = sor.u32 %s31, %s32
      %p34 = scmp.eq.s32.totalorder %s33, 0
      %s36 = sadd.s32 %s35, 1
      %s37 = scalar_select %p34, %s35, %s36
      %p40 = pneg %p34
      %p41 = scmp.eq.s32.totalorder %s11, 3
      %p42 = por %p40, %p41
      %p43 = scmp.ne.s32.totalorder %s35, %s38
      %p44 = scmp.eq.s32.totalorder %s11, 0
      %p45 = por %p43, %p44
      %p46 = scmp.ne.s32.totalorder %s35, %s38
      %p47 = scmp.eq.s32.totalorder %s16, 3
      %p48 = por %p46, %p47
      %p49 = scmp.ne.s32.totalorder %s38, %s39
      %p50 = scmp.eq.s32.totalorder %s16, 0
      %p51 = por %p49, %p50
      %p52 = scmp.ne.s32.totalorder %s38, %s39
      %p53 = scmp.eq.s32.totalorder %s17, 3
      %p54 = por %p52, %p53
      %p56 = scmp.ne.s32.totalorder %s39, %s55
      %p57 = scmp.eq.s32.totalorder %s17, 0
      %p58 = por %p56, %p57
      %s60 = sadd.s32 %s59, 1
      %p63 = scmp.eq.s32.totalorder %s11, 3
      %p64 = scmp.ne.s32.totalorder %s59, %s61
      %p65 = scmp.eq.s32.totalorder %s11, 0
      %p66 = por %p64, %p65
      %p67 = scmp.ne.s32.totalorder %s59, %s61
      %p68 = scmp.eq.s32.totalorder %s16, 3
      %p69 = por %p67, %p68
      %p70 = scmp.ne.s32.totalorder %s61, %s62
      %p71 = scmp.eq.s32.totalorder %s16, 0
      %p72 = por %p70, %p71
      %p73 = scmp.ne.s32.totalorder %s61, %s62
      %p74 = scmp.eq.s32.totalorder %s17, 3
      %p75 = por %p73, %p74
      %p77 = scmp.ne.s32.totalorder %s62, %s76
      %p78 = scmp.eq.s32.totalorder %s17, 0
      %p79 = por %p77, %p78
      %s80 = ssub.s32 %s18, %s30
      %p81 = scmp.eq.s32.totalorder %s80, 0
      %s83 = sadd.s32 %s82, 1
      %s84 = scalar_select %p81, %s82, %s83
      %p87 = pneg %p81
      %p88 = scmp.eq.s32.totalorder %s11, 3
      %p89 = por %p87, %p88
      %p90 = scmp.ne.s32.totalorder %s82, %s85
      %p91 = scmp.eq.s32.totalorder %s11, 0
      %p92 = por %p90, %p91
      %p93 = scmp.ne.s32.totalorder %s82, %s85
      %p94 = scmp.eq.s32.totalorder %s16, 3
      %p95 = por %p93, %p94
      %p96 = scmp.ne.s32.totalorder %s85, %s86
      %p97 = scmp.eq.s32.totalorder %s16, 0
      %p98 = por %p96, %p97
      %p99 = scmp.ne.s32.totalorder %s85, %s86
      %p100 = scmp.eq.s32.totalorder %s17, 3
      %p101 = por %p99, %p100
      %p103 = scmp.ne.s32.totalorder %s86, %s102
      %p104 = scmp.eq.s32.totalorder %s17, 0
      %p105 = por %p103, %p104
      %s107 = sadd.s32 %s106, 1
      %p110 = scmp.eq.s32.totalorder %s11, 3
      %p111 = scmp.ne.s32.totalorder %s106, %s108
      %p112 = scmp.eq.s32.totalorder %s11, 0
      %p113 = por %p111, %p112
      %p114 = scmp.ne.s32.totalorder %s106, %s108
      %p115 = scmp.eq.s32.totalorder %s16, 3
      %p116 = por %p114, %p115
      %p117 = scmp.ne.s32.totalorder %s108, %s109
      %p118 = scmp.eq.s32.totalorder %s16, 0
      %p119 = por %p117, %p118
      %p120 = scmp.ne.s32.totalorder %s108, %s109
      %p121 = scmp.eq.s32.totalorder %s17, 3
      %p122 = por %p120, %p121
      %p124 = scmp.ne.s32.totalorder %s109, %s123
      %p125 = scmp.eq.s32.totalorder %s17, 0
      %p126 = por %p124, %p125
      %s128 = sadd.s32 %s127, 1
      %p131 = scmp.eq.s32.totalorder %s11, 3
      %p132 = scmp.ne.s32.totalorder %s127, %s129
      %p133 = scmp.eq.s32.totalorder %s11, 0
      %p134 = por %p132, %p133
      %p135 = scmp.ne.s32.totalorder %s127, %s129
      %p136 = scmp.eq.s32.totalorder %s16, 3
      %p137 = por %p135, %p136
      %p138 = scmp.ne.s32.totalorder %s129, %s130
      %p139 = scmp.eq.s32.totalorder %s16, 0
      %p140 = por %p138, %p139
      %p141 = scmp.ne.s32.totalorder %s129, %s130
      %p142 = scmp.eq.s32.totalorder %s17, 3
      %p143 = por %p141, %p142
      %p145 = scmp.ne.s32.totalorder %s130, %s144
      %p146 = scmp.eq.s32.totalorder %s17, 0
      %p147 = por %p145, %p146
      %s148 = ssub.s32 %s18, %s30
      %p149 = scmp.eq.s32.totalorder %s148, 0
      %s151 = sadd.s32 %s150, 1
      %s152 = scalar_select %p149, %s150, %s151
      %p155 = pneg %p149
      %p156 = scmp.eq.s32.totalorder %s11, 3
      %p157 = por %p155, %p156
      %p158 = scmp.ne.s32.totalorder %s150, %s153
      %p159 = scmp.eq.s32.totalorder %s11, 0
      %p160 = por %p158, %p159
      %p161 = scmp.ne.s32.totalorder %s150, %s153
      %p162 = scmp.eq.s32.totalorder %s16, 3
      %p163 = por %p161, %p162
      %p164 = scmp.ne.s32.totalorder %s153, %s154
      %p165 = scmp.eq.s32.totalorder %s16, 0
      %p166 = por %p164, %p165
      %p167 = scmp.ne.s32.totalorder %s153, %s154
      %p168 = scmp.eq.s32.totalorder %s17, 3
      %p169 = por %p167, %p168
      %p171 = scmp.ne.s32.totalorder %s154, %s170
      %p172 = scmp.eq.s32.totalorder %s17, 0
      %p173 = por %p171, %p172
      %p174 = scmp.le.s32.totalorder 1, %s11
      %p175 = scmp.lt.s32.totalorder %s11, 5
      %p176 = pnand %p174, %p175
      %p177 = pneg %p176
      // Predicated region
      $region9: #{graph_base_block_forward.6} parent=5 // pred_check
        _
      $region10: #{graph_base_block_forward.6} parent=5 // pred_check_branch
        %179 = sbr.rel (%p176) target = $region12
      $region11: #{graph_base_block_forward.6} parent=5 // pred_region
        %s180 = ssub.s32 %s11, 1
        // Predicated region
        $region13: #{graph_base_block_forward.6} parent=11 // pred_check
          %p181 = pneg %p72
        $region14: #{graph_base_block_forward.6} parent=11 // pred_check_branch
          %183 = sbr.rel (%p181) target = $region16
        $region15: #{graph_base_block_forward.6} parent=11 // pred_region
          // Predicated region
          $region17: #{graph_base_block_forward.6} parent=15 // pred_check
            _
          $region18: #{graph_base_block_forward.6} parent=15 // pred_check_branch
            %185 = sbr.rel (0) target = $region20
          $region19: #{graph_base_block_forward.6} parent=15 // pred_region
            // Predicated region
            $region21: #{graph_base_block_forward.6} parent=19 // pred_check
              _
            $region22: #{graph_base_block_forward.6} parent=19 // pred_check_branch
              %187 = sbr.rel (0) target = $region24
            $region23: #{graph_base_block_forward.6} parent=19 // pred_region
              // Predicated region
              $region36: #{graph_base_block_forward.6} parent=23 // pred_check
                _
              $region37: #{graph_base_block_forward.6} parent=23 // pred_check_branch
                %264 = sbr.rel (0) target = $region39
              $region38: #{graph_base_block_forward.6} parent=23 // pred_region
                loop: start=0, step=1, limit=1
                $region40: #{graph_base_block_forward.6} parent=38 // loop_pre_header
                  _
                $region41: #{graph_base_block_forward.6} parent=38 // loop_header
                  %s266 = sphi 0, %s270
                  %p267 = scmp.ge.s32.totalorder %s266, 1
                  %s271 = sphi %s1, %s1
                  %s272 = sphi [#allocation4], [#allocation4]
                $region42: #{graph_base_block_forward.6} parent=38 // loop_header_branch
                  %269 = sbr.rel (%p267) target = $region46
                $region43: #{graph_base_block_forward.6} parent=38 // loop_body
                  %v273 = vld [vmem:[%s271] sm:$0xff]
                  %274 = vst [vmem:[%s272] sm:$0xff] %v273
                  %v275 = vld [vmem:[%s271 + $0x10] sm:$0xff]
                  %276 = vst [vmem:[%s272 + $0x8] sm:$0xff] %v275
                  %v277 = vld [vmem:[%s271 + $0x20] sm:$0xff]
                  %278 = vst [vmem:[%s272 + $0x10] sm:$0xff] %v277
                  %v279 = vld [vmem:[%s271 + $0x30] sm:$0xff]
                  %280 = vst [vmem:[%s272 + $0x18] sm:$0xff] %v279
                  %v281 = vld [vmem:[%s271 + $0x40] sm:$0xff]
                  %282 = vst [vmem:[%s272 + $0x20] sm:$0xff] %v281
                  %v283 = vld [vmem:[%s271 + $0x50] sm:$0xff]
                  %284 = vst [vmem:[%s272 + $0x28] sm:$0xff] %v283
                  %v285 = vld [vmem:[%s271 + $0x60] sm:$0xff]
                  %286 = vst [vmem:[%s272 + $0x30] sm:$0xff] %v285
                  %v287 = vld [vmem:[%s271 + $0x70] sm:$0xff]
                  %288 = vst [vmem:[%s272 + $0x38] sm:$0xff] %v287
                  %v289 = vld [vmem:[%s271 + $0x80] sm:$0xff]
                  %290 = vst [vmem:[%s272 + $0x40] sm:$0xff] %v289
                  %v291 = vld [vmem:[%s271 + $0x90] sm:$0xff]
                  %292 = vst [vmem:[%s272 + $0x48] sm:$0xff] %v291
                  %v293 = vld [vmem:[%s271 + $0xa0] sm:$0xff]
                  %294 = vst [vmem:[%s272 + $0x50] sm:$0xff] %v293
                  %v295 = vld [vmem:[%s271 + $0xb0] sm:$0xff]
                  %296 = vst [vmem:[%s272 + $0x58] sm:$0xff] %v295
                  %v297 = vld [vmem:[%s271 + $0xc0] sm:$0xff]
                  %298 = vst [vmem:[%s272 + $0x60] sm:$0xff] %v297
                  %v299 = vld [vmem:[%s271 + $0xd0] sm:$0xff]
                  %300 = vst [vmem:[%s272 + $0x68] sm:$0xff] %v299
                  %v301 = vld [vmem:[%s271 + $0xe0] sm:$0xff]
                  %302 = vst [vmem:[%s272 + $0x70] sm:$0xff] %v301
                  %v303 = vld [vmem:[%s271 + $0xf0] sm:$0xff]
                  %304 = vst [vmem:[%s272 + $0x78] sm:$0xff] %v303
                  %v305 = vld [vmem:[%s271 + $0x100] sm:$0xff]
                  %306 = vst [vmem:[%s272 + $0x80] sm:$0xff] %v305
                  %v307 = vld [vmem:[%s271 + $0x110] sm:$0xff]
                  %308 = vst [vmem:[%s272 + $0x88] sm:$0xff] %v307
                  %v309 = vld [vmem:[%s271 + $0x120] sm:$0xff]
                  %310 = vst [vmem:[%s272 + $0x90] sm:$0xff] %v309
                  %v311 = vld [vmem:[%s271 + $0x130] sm:$0xff]
                  %312 = vst [vmem:[%s272 + $0x98] sm:$0xff] %v311
                  %v313 = vld [vmem:[%s271 + $0x140] sm:$0xff]
                  %314 = vst [vmem:[%s272 + $0xa0] sm:$0xff] %v313
                  %v315 = vld [vmem:[%s271 + $0x150] sm:$0xff]
                  %316 = vst [vmem:[%s272 + $0xa8] sm:$0xff] %v315
                  %v317 = vld [vmem:[%s271 + $0x160] sm:$0xff]
                  %318 = vst [vmem:[%s272 + $0xb0] sm:$0xff] %v317
                  %v319 = vld [vmem:[%s271 + $0x170] sm:$0xff]
                  %320 = vst [vmem:[%s272 + $0xb8] sm:$0xff] %v319
                  %v321 = vld [vmem:[%s271 + $0x180] sm:$0xff]
                  %322 = vst [vmem:[%s272 + $0xc0] sm:$0xff] %v321
                  %v323 = vld [vmem:[%s271 + $0x190] sm:$0xff]
                  %324 = vst [vmem:[%s272 + $0xc8] sm:$0xff] %v323
                  %v325 = vld [vmem:[%s271 + $0x1a0] sm:$0xff]
                  %326 = vst [vmem:[%s272 + $0xd0] sm:$0xff] %v325
                  %v327 = vld [vmem:[%s271 + $0x1b0] sm:$0xff]
                  %328 = vst [vmem:[%s272 + $0xd8] sm:$0xff] %v327
                  %v329 = vld [vmem:[%s271 + $0x1c0] sm:$0xff]
                  %330 = vst [vmem:[%s272 + $0xe0] sm:$0xff] %v329
                  %v331 = vld [vmem:[%s271 + $0x1d0] sm:$0xff]
                  %332 = vst [vmem:[%s272 + $0xe8] sm:$0xff] %v331
                  %v333 = vld [vmem:[%s271 + $0x1e0] sm:$0xff]
                  %334 = vst [vmem:[%s272 + $0xf0] sm:$0xff] %v333
                  %v335 = vld [vmem:[%s271 + $0x1f0] sm:$0xff]
                  %336 = vst [vmem:[%s272 + $0xf8] sm:$0xff] %v335
                $region44: #{graph_base_block_forward.6} parent=38 // loop_footer
                  %s270 = sadd.s32 1, %s266
                $region45: #{graph_base_block_forward.6} parent=38 // loop_footer_branch
                  %265 = sbr.rel target = $region41
                $region46: #{graph_base_block_forward.6} parent=38 // loop_exit
                  _
              $region39: #{graph_base_block_forward.6} parent=23 // pred_fallthru
                _
              // Predicated region
              $region47: #{graph_base_block_forward.6} parent=23 // pred_check
                _
              $region48: #{graph_base_block_forward.6} parent=23 // pred_check_branch
                %338 = sbr.rel target = $region50
              $region49: #{graph_base_block_forward.6} parent=23 // pred_region
                _
              $region50: #{graph_base_block_forward.6} parent=23 // pred_fallthru
                _
            $region24: #{graph_base_block_forward.6} parent=19 // pred_fallthru
              _
            // Predicated region
            $region25: #{graph_base_block_forward.6} parent=19 // pred_check
              _
            $region26: #{graph_base_block_forward.6} parent=19 // pred_check_branch
              %189 = sbr.rel target = $region28
            $region27: #{graph_base_block_forward.6} parent=19 // pred_region
              loop: start=0, step=1, limit=1
              $region29: #{graph_base_block_forward.6} parent=27 // loop_pre_header
                _
              $region30: #{graph_base_block_forward.6} parent=27 // loop_header
                %s192 = sphi 0, %s196
                %p193 = scmp.ge.s32.totalorder %s192, 1
                %s197 = sphi %s1, %s1
                %s198 = sphi [#allocation4], [#allocation4]
              $region31: #{graph_base_block_forward.6} parent=27 // loop_header_branch
                %195 = sbr.rel (%p193) target = $region35
              $region32: #{graph_base_block_forward.6} parent=27 // loop_body
                %v199 = vld [vmem:[%s197] sm:$0xff]
                %200 = vst [vmem:[%s198] sm:$0xff] %v199
                %v201 = vld [vmem:[%s197 + $0x10] sm:$0xff]
                %202 = vst [vmem:[%s198 + $0x8] sm:$0xff] %v201
                %v203 = vld [vmem:[%s197 + $0x20] sm:$0xff]
                %204 = vst [vmem:[%s198 + $0x10] sm:$0xff] %v203
                %v205 = vld [vmem:[%s197 + $0x30] sm:$0xff]
                %206 = vst [vmem:[%s198 + $0x18] sm:$0xff] %v205
                %v207 = vld [vmem:[%s197 + $0x40] sm:$0xff]
                %208 = vst [vmem:[%s198 + $0x20] sm:$0xff] %v207
                %v209 = vld [vmem:[%s197 + $0x50] sm:$0xff]
                %210 = vst [vmem:[%s198 + $0x28] sm:$0xff] %v209
                %v211 = vld [vmem:[%s197 + $0x60] sm:$0xff]
                %212 = vst [vmem:[%s198 + $0x30] sm:$0xff] %v211
                %v213 = vld [vmem:[%s197 + $0x70] sm:$0xff]
                %214 = vst [vmem:[%s198 + $0x38] sm:$0xff] %v213
                %v215 = vld [vmem:[%s197 + $0x80] sm:$0xff]
                %216 = vst [vmem:[%s198 + $0x40] sm:$0xff] %v215
                %v217 = vld [vmem:[%s197 + $0x90] sm:$0xff]
                %218 = vst [vmem:[%s198 + $0x48] sm:$0xff] %v217
                %v219 = vld [vmem:[%s197 + $0xa0] sm:$0xff]
                %220 = vst [vmem:[%s198 + $0x50] sm:$0xff] %v219
                %v221 = vld [vmem:[%s197 + $0xb0] sm:$0xff]
                %222 = vst [vmem:[%s198 + $0x58] sm:$0xff] %v221
                %v223 = vld [vmem:[%s197 + $0xc0] sm:$0xff]
                %224 = vst [vmem:[%s198 + $0x60] sm:$0xff] %v223
                %v225 = vld [vmem:[%s197 + $0xd0] sm:$0xff]
                %226 = vst [vmem:[%s198 + $0x68] sm:$0xff] %v225
                %v227 = vld [vmem:[%s197 + $0xe0] sm:$0xff]
                %228 = vst [vmem:[%s198 + $0x70] sm:$0xff] %v227
                %v229 = vld [vmem:[%s197 + $0xf0] sm:$0xff]
                %230 = vst [vmem:[%s198 + $0x78] sm:$0xff] %v229
                %v231 = vld [vmem:[%s197 + $0x100] sm:$0xff]
                %232 = vst [vmem:[%s198 + $0x80] sm:$0xff] %v231
                %v233 = vld [vmem:[%s197 + $0x110] sm:$0xff]
                %234 = vst [vmem:[%s198 + $0x88] sm:$0xff] %v233
                %v235 = vld [vmem:[%s197 + $0x120] sm:$0xff]
                %236 = vst [vmem:[%s198 + $0x90] sm:$0xff] %v235
                %v237 = vld [vmem:[%s197 + $0x130] sm:$0xff]
                %238 = vst [vmem:[%s198 + $0x98] sm:$0xff] %v237
                %v239 = vld [vmem:[%s197 + $0x140] sm:$0xff]
                %240 = vst [vmem:[%s198 + $0xa0] sm:$0xff] %v239
                %v241 = vld [vmem:[%s197 + $0x150] sm:$0xff]
                %242 = vst [vmem:[%s198 + $0xa8] sm:$0xff] %v241
                %v243 = vld [vmem:[%s197 + $0x160] sm:$0xff]
                %244 = vst [vmem:[%s198 + $0xb0] sm:$0xff] %v243
                %v245 = vld [vmem:[%s197 + $0x170] sm:$0xff]
                %246 = vst [vmem:[%s198 + $0xb8] sm:$0xff] %v245
                %v247 = vld [vmem:[%s197 + $0x180] sm:$0xff]
                %248 = vst [vmem:[%s198 + $0xc0] sm:$0xff] %v247
                %v249 = vld [vmem:[%s197 + $0x190] sm:$0xff]
                %250 = vst [vmem:[%s198 + $0xc8] sm:$0xff] %v249
                %v251 = vld [vmem:[%s197 + $0x1a0] sm:$0xff]
                %252 = vst [vmem:[%s198 + $0xd0] sm:$0xff] %v251
                %v253 = vld [vmem:[%s197 + $0x1b0] sm:$0xff]
                %254 = vst [vmem:[%s198 + $0xd8] sm:$0xff] %v253
                %v255 = vld [vmem:[%s197 + $0x1c0] sm:$0xff]
                %256 = vst [vmem:[%s198 + $0xe0] sm:$0xff] %v255
                %v257 = vld [vmem:[%s197 + $0x1d0] sm:$0xff]
                %258 = vst [vmem:[%s198 + $0xe8] sm:$0xff] %v257
                %v259 = vld [vmem:[%s197 + $0x1e0] sm:$0xff]
                %260 = vst [vmem:[%s198 + $0xf0] sm:$0xff] %v259
                %v261 = vld [vmem:[%s197 + $0x1f0] sm:$0xff]
                %262 = vst [vmem:[%s198 + $0xf8] sm:$0xff] %v261
              $region33: #{graph_base_block_forward.6} parent=27 // loop_footer
                %s196 = sadd.s32 1, %s192
              $region34: #{graph_base_block_forward.6} parent=27 // loop_footer_branch
                %191 = sbr.rel target = $region30
              $region35: #{graph_base_block_forward.6} parent=27 // loop_exit
                _
            $region28: #{graph_base_block_forward.6} parent=19 // pred_fallthru
              _
          $region20: #{graph_base_block_forward.6} parent=15 // pred_fallthru
            _
          %339 = vnop
        $region16: #{graph_base_block_forward.6} parent=11 // pred_fallthru
          _
        // Predicated region
        $region51: #{graph_base_block_forward.6} parent=11 // pred_check
          %p340 = pneg %p119
        $region52: #{graph_base_block_forward.6} parent=11 // pred_check_branch
          %342 = sbr.rel (%p340) target = $region54
        $region53: #{graph_base_block_forward.6} parent=11 // pred_region
          _
        $region54: #{graph_base_block_forward.6} parent=11 // pred_fallthru
          _
        // Predicated region
        $region55: #{graph_base_block_forward.6} parent=11 // pred_check
          %p343 = pneg %p140
        $region56: #{graph_base_block_forward.6} parent=11 // pred_check_branch
          %345 = sbr.rel (%p343) target = $region58
        $region57: #{graph_base_block_forward.6} parent=11 // pred_region
          _
        $region58: #{graph_base_block_forward.6} parent=11 // pred_fallthru
          _
      $region12: #{graph_base_block_forward.6} parent=5 // pred_fallthru
        _
      %p346 = scmp.lt.s32.totalorder %s11, 4
      // Predicated region
      $region59: #{graph_base_block_forward.6} parent=5 // pred_check
        %p347 = pneg %p346
      $region60: #{graph_base_block_forward.6} parent=5 // pred_check_branch
        %349 = sbr.rel (%p347) target = $region62
      $region61: #{graph_base_block_forward.6} parent=5 // pred_region
        // Predicated region
        $region63: #{graph_base_block_forward.6} parent=61 // pred_check
          %p350 = pneg %p45
        $region64: #{graph_base_block_forward.6} parent=61 // pred_check_branch
          %352 = sbr.rel (%p350) target = $region66
        $region65: #{graph_base_block_forward.6} parent=61 // pred_region
          %s353 = sand.u32 %s35, 1
          %s354 = sand.u32 %s35, 1
          %s355 = smul.addr %s354, 128
          %s356 = scalar_lea.vmem [#allocation3], %s355
          %s357 = smul.u32 16, %s18
          %s358 = smul.addr %s357, 2
          %s359 = sadd.s32 %s19, %s358
          %s360 = smul.addr %s359, 8
          %s361 = scalar_lea.vmem %s0, %s360
          // Predicated region
          $region67: #{graph_base_block_forward.6} parent=65 // pred_check
            _
          $region68: #{graph_base_block_forward.6} parent=65 // pred_check_branch
            %363 = sbr.rel (0) target = $region70
          $region69: #{graph_base_block_forward.6} parent=65 // pred_region
            // Predicated region
            $region71: #{graph_base_block_forward.6} parent=69 // pred_check
              _
            $region72: #{graph_base_block_forward.6} parent=69 // pred_check_branch
              %365 = sbr.rel (0) target = $region74
            $region73: #{graph_base_block_forward.6} parent=69 // pred_region
              // Predicated region
              $region86: #{graph_base_block_forward.6} parent=73 // pred_check
                _
              $region87: #{graph_base_block_forward.6} parent=73 // pred_check_branch
                %410 = sbr.rel (0) target = $region89
              $region88: #{graph_base_block_forward.6} parent=73 // pred_region
                loop: start=0, step=1, limit=1
                $region90: #{graph_base_block_forward.6} parent=88 // loop_pre_header
                  _
                $region91: #{graph_base_block_forward.6} parent=88 // loop_header
                  %s412 = sphi 0, %s416
                  %p413 = scmp.ge.s32.totalorder %s412, 1
                  %s417 = sphi %s361, %s361
                  %s418 = sphi %s356, %s356
                $region92: #{graph_base_block_forward.6} parent=88 // loop_header_branch
                  %415 = sbr.rel (%p413) target = $region96
                $region93: #{graph_base_block_forward.6} parent=88 // loop_body
                  %v419 = vld [vmem:[%s417] sm:$0xff]
                  %420 = vst [vmem:[%s418] sm:$0xff] %v419
                  %v421 = vld [vmem:[%s417 + $0x10] sm:$0xff]
                  %422 = vst [vmem:[%s418 + $0x8] sm:$0xff] %v421
                  %v423 = vld [vmem:[%s417 + $0x20] sm:$0xff]
                  %424 = vst [vmem:[%s418 + $0x10] sm:$0xff] %v423
                  %v425 = vld [vmem:[%s417 + $0x30] sm:$0xff]
                  %426 = vst [vmem:[%s418 + $0x18] sm:$0xff] %v425
                  %v427 = vld [vmem:[%s417 + $0x40] sm:$0xff]
                  %428 = vst [vmem:[%s418 + $0x20] sm:$0xff] %v427
                  %v429 = vld [vmem:[%s417 + $0x50] sm:$0xff]
                  %430 = vst [vmem:[%s418 + $0x28] sm:$0xff] %v429
                  %v431 = vld [vmem:[%s417 + $0x60] sm:$0xff]
                  %432 = vst [vmem:[%s418 + $0x30] sm:$0xff] %v431
                  %v433 = vld [vmem:[%s417 + $0x70] sm:$0xff]
                  %434 = vst [vmem:[%s418 + $0x38] sm:$0xff] %v433
                  %v435 = vld [vmem:[%s417 + $0x80] sm:$0xff]
                  %436 = vst [vmem:[%s418 + $0x40] sm:$0xff] %v435
                  %v437 = vld [vmem:[%s417 + $0x90] sm:$0xff]
                  %438 = vst [vmem:[%s418 + $0x48] sm:$0xff] %v437
                  %v439 = vld [vmem:[%s417 + $0xa0] sm:$0xff]
                  %440 = vst [vmem:[%s418 + $0x50] sm:$0xff] %v439
                  %v441 = vld [vmem:[%s417 + $0xb0] sm:$0xff]
                  %442 = vst [vmem:[%s418 + $0x58] sm:$0xff] %v441
                  %v443 = vld [vmem:[%s417 + $0xc0] sm:$0xff]
                  %444 = vst [vmem:[%s418 + $0x60] sm:$0xff] %v443
                  %v445 = vld [vmem:[%s417 + $0xd0] sm:$0xff]
                  %446 = vst [vmem:[%s418 + $0x68] sm:$0xff] %v445
                  %v447 = vld [vmem:[%s417 + $0xe0] sm:$0xff]
                  %448 = vst [vmem:[%s418 + $0x70] sm:$0xff] %v447
                  %v449 = vld [vmem:[%s417 + $0xf0] sm:$0xff]
                  %450 = vst [vmem:[%s418 + $0x78] sm:$0xff] %v449
                $region94: #{graph_base_block_forward.6} parent=88 // loop_footer
                  %s416 = sadd.s32 1, %s412
                $region95: #{graph_base_block_forward.6} parent=88 // loop_footer_branch
                  %411 = sbr.rel target = $region91
                $region96: #{graph_base_block_forward.6} parent=88 // loop_exit
                  _
              $region89: #{graph_base_block_forward.6} parent=73 // pred_fallthru
                _
              // Predicated region
              $region97: #{graph_base_block_forward.6} parent=73 // pred_check
                _
              $region98: #{graph_base_block_forward.6} parent=73 // pred_check_branch
                %452 = sbr.rel target = $region100
              $region99: #{graph_base_block_forward.6} parent=73 // pred_region
                _
              $region100: #{graph_base_block_forward.6} parent=73 // pred_fallthru
                _
            $region74: #{graph_base_block_forward.6} parent=69 // pred_fallthru
              _
            // Predicated region
            $region75: #{graph_base_block_forward.6} parent=69 // pred_check
              _
            $region76: #{graph_base_block_forward.6} parent=69 // pred_check_branch
              %367 = sbr.rel target = $region78
            $region77: #{graph_base_block_forward.6} parent=69 // pred_region
              loop: start=0, step=1, limit=1
              $region79: #{graph_base_block_forward.6} parent=77 // loop_pre_header
                _
              $region80: #{graph_base_block_forward.6} parent=77 // loop_header
                %s370 = sphi 0, %s374
                %p371 = scmp.ge.s32.totalorder %s370, 1
                %s375 = sphi %s361, %s361
                %s376 = sphi %s356, %s356
              $region81: #{graph_base_block_forward.6} parent=77 // loop_header_branch
                %373 = sbr.rel (%p371) target = $region85
              $region82: #{graph_base_block_forward.6} parent=77 // loop_body
                %v377 = vld [vmem:[%s375] sm:$0xff]
                %378 = vst [vmem:[%s376] sm:$0xff] %v377
                %v379 = vld [vmem:[%s375 + $0x10] sm:$0xff]
                %380 = vst [vmem:[%s376 + $0x8] sm:$0xff] %v379
                %v381 = vld [vmem:[%s375 + $0x20] sm:$0xff]
                %382 = vst [vmem:[%s376 + $0x10] sm:$0xff] %v381
                %v383 = vld [vmem:[%s375 + $0x30] sm:$0xff]
                %384 = vst [vmem:[%s376 + $0x18] sm:$0xff] %v383
                %v385 = vld [vmem:[%s375 + $0x40] sm:$0xff]
                %386 = vst [vmem:[%s376 + $0x20] sm:$0xff] %v385
                %v387 = vld [vmem:[%s375 + $0x50] sm:$0xff]
                %388 = vst [vmem:[%s376 + $0x28] sm:$0xff] %v387
                %v389 = vld [vmem:[%s375 + $0x60] sm:$0xff]
                %390 = vst [vmem:[%s376 + $0x30] sm:$0xff] %v389
                %v391 = vld [vmem:[%s375 + $0x70] sm:$0xff]
                %392 = vst [vmem:[%s376 + $0x38] sm:$0xff] %v391
                %v393 = vld [vmem:[%s375 + $0x80] sm:$0xff]
                %394 = vst [vmem:[%s376 + $0x40] sm:$0xff] %v393
                %v395 = vld [vmem:[%s375 + $0x90] sm:$0xff]
                %396 = vst [vmem:[%s376 + $0x48] sm:$0xff] %v395
                %v397 = vld [vmem:[%s375 + $0xa0] sm:$0xff]
                %398 = vst [vmem:[%s376 + $0x50] sm:$0xff] %v397
                %v399 = vld [vmem:[%s375 + $0xb0] sm:$0xff]
                %400 = vst [vmem:[%s376 + $0x58] sm:$0xff] %v399
                %v401 = vld [vmem:[%s375 + $0xc0] sm:$0xff]
                %402 = vst [vmem:[%s376 + $0x60] sm:$0xff] %v401
                %v403 = vld [vmem:[%s375 + $0xd0] sm:$0xff]
                %404 = vst [vmem:[%s376 + $0x68] sm:$0xff] %v403
                %v405 = vld [vmem:[%s375 + $0xe0] sm:$0xff]
                %406 = vst [vmem:[%s376 + $0x70] sm:$0xff] %v405
                %v407 = vld [vmem:[%s375 + $0xf0] sm:$0xff]
                %408 = vst [vmem:[%s376 + $0x78] sm:$0xff] %v407
              $region83: #{graph_base_block_forward.6} parent=77 // loop_footer
                %s374 = sadd.s32 1, %s370
              $region84: #{graph_base_block_forward.6} parent=77 // loop_footer_branch
                %369 = sbr.rel target = $region80
              $region85: #{graph_base_block_forward.6} parent=77 // loop_exit
                _
            $region78: #{graph_base_block_forward.6} parent=69 // pred_fallthru
              _
          $region70: #{graph_base_block_forward.6} parent=65 // pred_fallthru
            _
          %453 = vnop
        $region66: #{graph_base_block_forward.6} parent=61 // pred_fallthru
          _
        // Predicated region
        $region101: #{graph_base_block_forward.6} parent=61 // pred_check
          %p454 = pneg %p92
        $region102: #{graph_base_block_forward.6} parent=61 // pred_check_branch
          %456 = sbr.rel (%p454) target = $region104
        $region103: #{graph_base_block_forward.6} parent=61 // pred_region
          %s457 = sand.u32 %s82, 1
          %s458 = sand.u32 %s82, 1
          %s459 = smul.addr %s458, 128
          %s460 = scalar_lea.vmem [#allocation5], %s459
          %s461 = smul.u32 16, %s18
          %s462 = smul.addr %s461, 2
          %s463 = sadd.s32 1, %s462
          %s464 = smul.addr %s463, 8
          %s465 = scalar_lea.vmem %s2, %s464
          // Predicated region
          $region105: #{graph_base_block_forward.6} parent=103 // pred_check
            _
          $region106: #{graph_base_block_forward.6} parent=103 // pred_check_branch
            %467 = sbr.rel (0) target = $region108
          $region107: #{graph_base_block_forward.6} parent=103 // pred_region
            // Predicated region
            $region109: #{graph_base_block_forward.6} parent=107 // pred_check
              _
            $region110: #{graph_base_block_forward.6} parent=107 // pred_check_branch
              %469 = sbr.rel (0) target = $region112
            $region111: #{graph_base_block_forward.6} parent=107 // pred_region
              // Predicated region
              $region124: #{graph_base_block_forward.6} parent=111 // pred_check
                _
              $region125: #{graph_base_block_forward.6} parent=111 // pred_check_branch
                %514 = sbr.rel (0) target = $region127
              $region126: #{graph_base_block_forward.6} parent=111 // pred_region
                loop: start=0, step=1, limit=1
                $region128: #{graph_base_block_forward.6} parent=126 // loop_pre_header
                  _
                $region129: #{graph_base_block_forward.6} parent=126 // loop_header
                  %s516 = sphi 0, %s520
                  %p517 = scmp.ge.s32.totalorder %s516, 1
                  %s521 = sphi %s465, %s465
                  %s522 = sphi %s460, %s460
                $region130: #{graph_base_block_forward.6} parent=126 // loop_header_branch
                  %519 = sbr.rel (%p517) target = $region134
                $region131: #{graph_base_block_forward.6} parent=126 // loop_body
                  %v523 = vld [vmem:[%s521] sm:$0xff]
                  %524 = vst [vmem:[%s522] sm:$0xff] %v523
                  %v525 = vld [vmem:[%s521 + $0x10] sm:$0xff]
                  %526 = vst [vmem:[%s522 + $0x8] sm:$0xff] %v525
                  %v527 = vld [vmem:[%s521 + $0x20] sm:$0xff]
                  %528 = vst [vmem:[%s522 + $0x10] sm:$0xff] %v527
                  %v529 = vld [vmem:[%s521 + $0x30] sm:$0xff]
                  %530 = vst [vmem:[%s522 + $0x18] sm:$0xff] %v529
                  %v531 = vld [vmem:[%s521 + $0x40] sm:$0xff]
                  %532 = vst [vmem:[%s522 + $0x20] sm:$0xff] %v531
                  %v533 = vld [vmem:[%s521 + $0x50] sm:$0xff]
                  %534 = vst [vmem:[%s522 + $0x28] sm:$0xff] %v533
                  %v535 = vld [vmem:[%s521 + $0x60] sm:$0xff]
                  %536 = vst [vmem:[%s522 + $0x30] sm:$0xff] %v535
                  %v537 = vld [vmem:[%s521 + $0x70] sm:$0xff]
                  %538 = vst [vmem:[%s522 + $0x38] sm:$0xff] %v537
                  %v539 = vld [vmem:[%s521 + $0x80] sm:$0xff]
                  %540 = vst [vmem:[%s522 + $0x40] sm:$0xff] %v539
                  %v541 = vld [vmem:[%s521 + $0x90] sm:$0xff]
                  %542 = vst [vmem:[%s522 + $0x48] sm:$0xff] %v541
                  %v543 = vld [vmem:[%s521 + $0xa0] sm:$0xff]
                  %544 = vst [vmem:[%s522 + $0x50] sm:$0xff] %v543
                  %v545 = vld [vmem:[%s521 + $0xb0] sm:$0xff]
                  %546 = vst [vmem:[%s522 + $0x58] sm:$0xff] %v545
                  %v547 = vld [vmem:[%s521 + $0xc0] sm:$0xff]
                  %548 = vst [vmem:[%s522 + $0x60] sm:$0xff] %v547
                  %v549 = vld [vmem:[%s521 + $0xd0] sm:$0xff]
                  %550 = vst [vmem:[%s522 + $0x68] sm:$0xff] %v549
                  %v551 = vld [vmem:[%s521 + $0xe0] sm:$0xff]
                  %552 = vst [vmem:[%s522 + $0x70] sm:$0xff] %v551
                  %v553 = vld [vmem:[%s521 + $0xf0] sm:$0xff]
                  %554 = vst [vmem:[%s522 + $0x78] sm:$0xff] %v553
                $region132: #{graph_base_block_forward.6} parent=126 // loop_footer
                  %s520 = sadd.s32 1, %s516
                $region133: #{graph_base_block_forward.6} parent=126 // loop_footer_branch
                  %515 = sbr.rel target = $region129
                $region134: #{graph_base_block_forward.6} parent=126 // loop_exit
                  _
              $region127: #{graph_base_block_forward.6} parent=111 // pred_fallthru
                _
              // Predicated region
              $region135: #{graph_base_block_forward.6} parent=111 // pred_check
                _
              $region136: #{graph_base_block_forward.6} parent=111 // pred_check_branch
                %556 = sbr.rel target = $region138
              $region137: #{graph_base_block_forward.6} parent=111 // pred_region
                _
              $region138: #{graph_base_block_forward.6} parent=111 // pred_fallthru
                _
            $region112: #{graph_base_block_forward.6} parent=107 // pred_fallthru
              _
            // Predicated region
            $region113: #{graph_base_block_forward.6} parent=107 // pred_check
              _
            $region114: #{graph_base_block_forward.6} parent=107 // pred_check_branch
              %471 = sbr.rel target = $region116
            $region115: #{graph_base_block_forward.6} parent=107 // pred_region
              loop: start=0, step=1, limit=1
              $region117: #{graph_base_block_forward.6} parent=115 // loop_pre_header
                _
              $region118: #{graph_base_block_forward.6} parent=115 // loop_header
                %s474 = sphi 0, %s478
                %p475 = scmp.ge.s32.totalorder %s474, 1
                %s479 = sphi %s465, %s465
                %s480 = sphi %s460, %s460
              $region119: #{graph_base_block_forward.6} parent=115 // loop_header_branch
                %477 = sbr.rel (%p475) target = $region123
              $region120: #{graph_base_block_forward.6} parent=115 // loop_body
                %v481 = vld [vmem:[%s479] sm:$0xff]
                %482 = vst [vmem:[%s480] sm:$0xff] %v481
                %v483 = vld [vmem:[%s479 + $0x10] sm:$0xff]
                %484 = vst [vmem:[%s480 + $0x8] sm:$0xff] %v483
                %v485 = vld [vmem:[%s479 + $0x20] sm:$0xff]
                %486 = vst [vmem:[%s480 + $0x10] sm:$0xff] %v485
                %v487 = vld [vmem:[%s479 + $0x30] sm:$0xff]
                %488 = vst [vmem:[%s480 + $0x18] sm:$0xff] %v487
                %v489 = vld [vmem:[%s479 + $0x40] sm:$0xff]
                %490 = vst [vmem:[%s480 + $0x20] sm:$0xff] %v489
                %v491 = vld [vmem:[%s479 + $0x50] sm:$0xff]
                %492 = vst [vmem:[%s480 + $0x28] sm:$0xff] %v491
                %v493 = vld [vmem:[%s479 + $0x60] sm:$0xff]
                %494 = vst [vmem:[%s480 + $0x30] sm:$0xff] %v493
                %v495 = vld [vmem:[%s479 + $0x70] sm:$0xff]
                %496 = vst [vmem:[%s480 + $0x38] sm:$0xff] %v495
                %v497 = vld [vmem:[%s479 + $0x80] sm:$0xff]
                %498 = vst [vmem:[%s480 + $0x40] sm:$0xff] %v497
                %v499 = vld [vmem:[%s479 + $0x90] sm:$0xff]
                %500 = vst [vmem:[%s480 + $0x48] sm:$0xff] %v499
                %v501 = vld [vmem:[%s479 + $0xa0] sm:$0xff]
                %502 = vst [vmem:[%s480 + $0x50] sm:$0xff] %v501
                %v503 = vld [vmem:[%s479 + $0xb0] sm:$0xff]
                %504 = vst [vmem:[%s480 + $0x58] sm:$0xff] %v503
                %v505 = vld [vmem:[%s479 + $0xc0] sm:$0xff]
                %506 = vst [vmem:[%s480 + $0x60] sm:$0xff] %v505
                %v507 = vld [vmem:[%s479 + $0xd0] sm:$0xff]
                %508 = vst [vmem:[%s480 + $0x68] sm:$0xff] %v507
                %v509 = vld [vmem:[%s479 + $0xe0] sm:$0xff]
                %510 = vst [vmem:[%s480 + $0x70] sm:$0xff] %v509
                %v511 = vld [vmem:[%s479 + $0xf0] sm:$0xff]
                %512 = vst [vmem:[%s480 + $0x78] sm:$0xff] %v511
              $region121: #{graph_base_block_forward.6} parent=115 // loop_footer
                %s478 = sadd.s32 1, %s474
              $region122: #{graph_base_block_forward.6} parent=115 // loop_footer_branch
                %473 = sbr.rel target = $region118
              $region123: #{graph_base_block_forward.6} parent=115 // loop_exit
                _
            $region116: #{graph_base_block_forward.6} parent=107 // pred_fallthru
              _
          $region108: #{graph_base_block_forward.6} parent=103 // pred_fallthru
            _
          %557 = vnop
        $region104: #{graph_base_block_forward.6} parent=61 // pred_fallthru
          _
      $region62: #{graph_base_block_forward.6} parent=5 // pred_fallthru
        _
      %p558 = scmp.le.s32.totalorder 1, %s11
      %p559 = scmp.lt.s32.totalorder %s11, 5
      %p560 = pnand %p558, %p559
      %p561 = pneg %p560
      // Predicated region
      $region139: #{graph_base_block_forward.6} parent=5 // pred_check
        _
      $region140: #{graph_base_block_forward.6} parent=5 // pred_check_branch
        %563 = sbr.rel (%p560) target = $region142
      $region141: #{graph_base_block_forward.6} parent=5 // pred_region
        %s564 = ssub.s32 %s11, 1
        %s565 = sand.u32 %s38, 1
        %s566 = sand.u32 %s38, 1
        %s567 = smul.addr %s566, 128
        %s568 = scalar_lea.vmem [#allocation3], %s567
        // Predicated region
        $region143: #{graph_base_block_forward.6} parent=141 // pred_check
          %p569 = pneg %p51
        $region144: #{graph_base_block_forward.6} parent=141 // pred_check_branch
          %571 = sbr.rel (%p569) target = $region146
        $region145: #{graph_base_block_forward.6} parent=141 // pred_region
          _
        $region146: #{graph_base_block_forward.6} parent=141 // pred_fallthru
          _
        // Predicated region
        $region147: #{graph_base_block_forward.6} parent=141 // pred_check
          %p572 = pneg %p72
        $region148: #{graph_base_block_forward.6} parent=141 // pred_check_branch
          %574 = sbr.rel (%p572) target = $region150
        $region149: #{graph_base_block_forward.6} parent=141 // pred_region
          _
        $region150: #{graph_base_block_forward.6} parent=141 // pred_fallthru
          _
        %s575 = sand.u32 %s85, 1
        %s576 = sand.u32 %s85, 1
        %s577 = smul.addr %s576, 128
        %s578 = scalar_lea.vmem [#allocation5], %s577
        // Predicated region
        $region151: #{graph_base_block_forward.6} parent=141 // pred_check
          %p579 = pneg %p98
        $region152: #{graph_base_block_forward.6} parent=141 // pred_check_branch
          %581 = sbr.rel (%p579) target = $region154
        $region153: #{graph_base_block_forward.6} parent=141 // pred_region
          _
        $region154: #{graph_base_block_forward.6} parent=141 // pred_fallthru
          _
        %s582 = sand.u32 %s38, 1
        %s583 = sand.u32 %s38, 1
        %s584 = smul.addr %s583, 128
        %s585 = scalar_lea.vmem [#allocation3], %s584
        %p586 = pneg %p51
        %p587 = pneg %p48
        %p588 = pneg %p72
        %p589 = pneg %p69
        %s590 = sand.u32 %s85, 1
        %s591 = sand.u32 %s85, 1
        %s592 = smul.addr %s591, 128
        %s593 = scalar_lea.vmem [#allocation5], %s592
        %p594 = pneg %p98
        %p595 = pneg %p95
        %p596 = pneg %p119
        %p597 = pneg %p116
        %p598 = pneg %p140
        %p599 = pneg %p137
        %p600 = pneg %p166
        %p601 = pneg %p163
        %s602 = smul.u32 16, %s20
        %p603 = scmp.lt.s32.totalorder %s602, 31
        %s604 = scalar_select %p603, %s602, 31
        %s605 = smul.addr %s604, 8
        %s606 = scalar_lea.vmem %s5, %s605
        %s607 = smul.u32 16, %s20
        %s608 = smul.u32 16, %s20
        %s609 = smul.u32 16, %s20
        %p610 = scmp.lt.s32.totalorder %s609, 31
        %s611 = scalar_select %p610, %s609, 31
        %s612 = smul.addr %s611, 8
        %s613 = scalar_lea.vmem %s5, %s612
        %s614 = smul.u32 16, %s20
        %p615 = scmp.eq.s32.totalorder %s21, 0
        // Predicated region
        $region155: #{graph_base_block_forward.6} parent=141 // pred_check
          %p616 = pneg %p615
        $region156: #{graph_base_block_forward.6} parent=141 // pred_check_branch
          %618 = sbr.rel (%p616) target = $region158
        $region157: #{graph_base_block_forward.6} parent=141 // pred_region
          %v619 = vld [vmem:[%s578] sm:$0xff]
          %v620 = vld [vmem:[%s578 + $0x8] sm:$0xff]
          %v621 = vld [vmem:[%s578 + $0x10] sm:$0xff]
          %v622 = vld [vmem:[%s578 + $0x18] sm:$0xff]
          %v623 = vld [vmem:[%s578 + $0x20] sm:$0xff]
          %v624 = vld [vmem:[%s578 + $0x28] sm:$0xff]
          %v625 = vld [vmem:[%s578 + $0x30] sm:$0xff]
          %v626 = vld [vmem:[%s578 + $0x38] sm:$0xff]
          %v627 = vld [vmem:[%s578 + $0x40] sm:$0xff]
          %v628 = vld [vmem:[%s578 + $0x48] sm:$0xff]
          %v629 = vld [vmem:[%s578 + $0x50] sm:$0xff]
          %v630 = vld [vmem:[%s578 + $0x58] sm:$0xff]
          %v631 = vld [vmem:[%s578 + $0x60] sm:$0xff]
          %v632 = vld [vmem:[%s578 + $0x68] sm:$0xff]
          %v633 = vld [vmem:[%s578 + $0x70] sm:$0xff]
          %v634 = vld [vmem:[%s578 + $0x78] sm:$0xff]
          %635 = vst [vmem:[#allocation2] sm:$0xff] %v619
          %636 = vst [vmem:[#allocation2 + $0x8] sm:$0xff] %v620
          %637 = vst [vmem:[#allocation2 + $0x10] sm:$0xff] %v621
          %638 = vst [vmem:[#allocation2 + $0x18] sm:$0xff] %v622
          %639 = vst [vmem:[#allocation2 + $0x20] sm:$0xff] %v623
          %640 = vst [vmem:[#allocation2 + $0x28] sm:$0xff] %v624
          %641 = vst [vmem:[#allocation2 + $0x30] sm:$0xff] %v625
          %642 = vst [vmem:[#allocation2 + $0x38] sm:$0xff] %v626
          %643 = vst [vmem:[#allocation2 + $0x40] sm:$0xff] %v627
          %644 = vst [vmem:[#allocation2 + $0x48] sm:$0xff] %v628
          %645 = vst [vmem:[#allocation2 + $0x50] sm:$0xff] %v629
          %646 = vst [vmem:[#allocation2 + $0x58] sm:$0xff] %v630
          %647 = vst [vmem:[#allocation2 + $0x60] sm:$0xff] %v631
          %648 = vst [vmem:[#allocation2 + $0x68] sm:$0xff] %v632
          %649 = vst [vmem:[#allocation2 + $0x70] sm:$0xff] %v633
          %650 = vst [vmem:[#allocation2 + $0x78] sm:$0xff] %v634
        $region158: #{graph_base_block_forward.6} parent=141 // pred_fallthru
          _
        %s651 = smul.u32 %s21, 128
        %s652 = scalar_lea.vmem [#allocation4], %s651
        %v653 = vld [vmem:[%s652] sm:$0xff]
        %v654 = vld [vmem:[%s652 + $0x8] sm:$0xff]
        %v655 = vld [vmem:[%s652 + $0x10] sm:$0xff]
        %v656 = vld [vmem:[%s652 + $0x18] sm:$0xff]
        %v657 = vld [vmem:[%s652 + $0x20] sm:$0xff]
        %v658 = vld [vmem:[%s652 + $0x28] sm:$0xff]
        %v659 = vld [vmem:[%s652 + $0x30] sm:$0xff]
        %v660 = vld [vmem:[%s652 + $0x38] sm:$0xff]
        %v661 = vld [vmem:[%s652 + $0x40] sm:$0xff]
        %v662 = vld [vmem:[%s652 + $0x48] sm:$0xff]
        %v663 = vld [vmem:[%s652 + $0x50] sm:$0xff]
        %v664 = vld [vmem:[%s652 + $0x58] sm:$0xff]
        %v665 = vld [vmem:[%s652 + $0x60] sm:$0xff]
        %v666 = vld [vmem:[%s652 + $0x68] sm:$0xff]
        %v667 = vld [vmem:[%s652 + $0x70] sm:$0xff]
        %v668 = vld [vmem:[%s652 + $0x78] sm:$0xff]
        %v669 = vld [vmem:[#allocation2] sm:$0xff]
        %v670 = vld [vmem:[#allocation2 + $0x8] sm:$0xff]
        %v671 = vld [vmem:[#allocation2 + $0x10] sm:$0xff]
        %v672 = vld [vmem:[#allocation2 + $0x18] sm:$0xff]
        %v673 = vld [vmem:[#allocation2 + $0x20] sm:$0xff]
        %v674 = vld [vmem:[#allocation2 + $0x28] sm:$0xff]
        %v675 = vld [vmem:[#allocation2 + $0x30] sm:$0xff]
        %v676 = vld [vmem:[#allocation2 + $0x38] sm:$0xff]
        %v677 = vld [vmem:[#allocation2 + $0x40] sm:$0xff]
        %v678 = vld [vmem:[#allocation2 + $0x48] sm:$0xff]
        %v679 = vld [vmem:[#allocation2 + $0x50] sm:$0xff]
        %v680 = vld [vmem:[#allocation2 + $0x58] sm:$0xff]
        %v681 = vld [vmem:[#allocation2 + $0x60] sm:$0xff]
        %v682 = vld [vmem:[#allocation2 + $0x68] sm:$0xff]
        %v683 = vld [vmem:[#allocation2 + $0x70] sm:$0xff]
        %v684 = vld [vmem:[#allocation2 + $0x78] sm:$0xff]
        %v685 = vld [vmem:[%s568] sm:$0xff]
        %v686 = vld [vmem:[%s568 + $0x8] sm:$0xff]
        %v687 = vld [vmem:[%s568 + $0x10] sm:$0xff]
        %v688 = vld [vmem:[%s568 + $0x18] sm:$0xff]
        %v689 = vld [vmem:[%s568 + $0x20] sm:$0xff]
        %v690 = vld [vmem:[%s568 + $0x28] sm:$0xff]
        %v691 = vld [vmem:[%s568 + $0x30] sm:$0xff]
        %v692 = vld [vmem:[%s568 + $0x38] sm:$0xff]
        %v693 = vld [vmem:[%s568 + $0x40] sm:$0xff]
        %v694 = vld [vmem:[%s568 + $0x48] sm:$0xff]
        %v695 = vld [vmem:[%s568 + $0x50] sm:$0xff]
        %v696 = vld [vmem:[%s568 + $0x58] sm:$0xff]
        %v697 = vld [vmem:[%s568 + $0x60] sm:$0xff]
        %v698 = vld [vmem:[%s568 + $0x68] sm:$0xff]
        %v699 = vld [vmem:[%s568 + $0x70] sm:$0xff]
        %v700 = vld [vmem:[%s568 + $0x78] sm:$0xff]
        %701 = vmatprep.subr.mxu0 0.0
        %702 = vmatpush1.msra.mxu0 %v653
        %703 = vmatprep.subr.mxu0 0.0
        %704 = vmatpush1.msra.mxu0 %v654
        %705 = vmatprep.subr.mxu0 0.0
        %706 = vmatpush1.msra.mxu0 %v655
        %707 = vmatprep.subr.mxu0 0.0
        %708 = vmatpush1.msra.mxu0 %v656
        %709 = vmatprep.subr.mxu0 0.0
        %710 = vmatpush1.msra.mxu0 %v657
        %711 = vmatprep.subr.mxu0 0.0
        %712 = vmatpush1.msra.mxu0 %v658
        %713 = vmatprep.subr.mxu0 0.0
        %714 = vmatpush1.msra.mxu0 %v659
        %715 = vmatprep.subr.mxu0 0.0
        %716 = vmatpush1.msra.mxu0 %v660
        %717 = vmatprep.subr.mxu0 0.0
        %718 = vmatpush1.msra.mxu0 %v661
        %719 = vmatprep.subr.mxu0 0.0
        %720 = vmatpush1.msra.mxu0 %v662
        %721 = vmatprep.subr.mxu0 0.0
        %722 = vmatpush1.msra.mxu0 %v663
        %723 = vmatprep.subr.mxu0 0.0
        %724 = vmatpush1.msra.mxu0 %v664
        %725 = vmatprep.subr.mxu0 0.0
        %726 = vmatpush1.msra.mxu0 %v665
        %727 = vmatprep.subr.mxu0 0.0
        %728 = vmatpush1.msra.mxu0 %v666
        %729 = vmatprep.subr.mxu0 0.0
        %730 = vmatpush1.msra.mxu0 %v667
        %731 = vmatprep.subr.mxu0 0.0
        %732 = vmatpush1.msra.mxu0 %v668
        %733 = vmatprep.subr.mxu0 0.0
        %734 = vmatpush1.msra.mxu0 0.0
        %735 = vmatprep.subr.mxu0 0.0
        %736 = vmatpush1.msra.mxu0 0.0
        %737 = vmatprep.subr.mxu0 0.0
        %738 = vmatpush1.msra.mxu0 0.0
        %739 = vmatprep.subr.mxu0 0.0
        %740 = vmatpush1.msra.mxu0 0.0
        %741 = vmatprep.subr.mxu0 0.0
        %742 = vmatpush1.msra.mxu0 0.0
        %743 = vmatprep.subr.mxu0 0.0
        %744 = vmatpush1.msra.mxu0 0.0
        %745 = vmatprep.subr.mxu0 0.0
        %746 = vmatpush1.msra.mxu0 0.0
        %747 = vmatprep.subr.mxu0 0.0
        %748 = vmatpush1.msra.mxu0 0.0
        %749 = vmatprep.subr.mxu0 0.0
        %750 = vmatpush1.msra.mxu0 0.0
        %751 = vmatprep.subr.mxu0 0.0
        %752 = vmatpush1.msra.mxu0 0.0
        %753 = vmatprep.subr.mxu0 0.0
        %754 = vmatpush1.msra.mxu0 0.0
        %755 = vmatprep.subr.mxu0 0.0
        %756 = vmatpush1.msra.mxu0 0.0
        %757 = vmatprep.subr.mxu0 0.0
        %758 = vmatpush1.msra.mxu0 0.0
        %759 = vmatprep.subr.mxu0 0.0
        %760 = vmatpush1.msra.mxu0 0.0
        %761 = vmatprep.subr.mxu0 0.0
        %762 = vmatpush1.msra.mxu0 0.0
        %763 = vmatprep.subr.mxu0 0.0
        %764 = vmatpush1.msra.mxu0 0.0
        %765 = vmatprep.mubr.f32.mxu0 0.0
        %766 = vmatmul.mubr.f32.gmra.mrb[0].mxu0 %v685
        %v767 = vpop.f32.mrb[0].mxu0
        %v768 = vadd.f32 0.0, %v767
        %v769 = vpop.f32.mrb[0].mxu0
        %770 = vmatprep.mubr.f32.mxu0 0.0
        %771 = vmatmul.mubr.f32.gmra.mrb[0].mxu0 %v686
        %v772 = vpop.f32.mrb[0].mxu0
        %v773 = vadd.f32 0.0, %v772
        %v774 = vpop.f32.mrb[0].mxu0
        %775 = vmatprep.mubr.f32.mxu0 0.0
        %776 = vmatmul.mubr.f32.gmra.mrb[0].mxu0 %v687
        %v777 = vpop.f32.mrb[0].mxu0
        %v778 = vadd.f32 0.0, %v777
        %v779 = vpop.f32.mrb[0].mxu0
        %780 = vmatprep.mubr.f32.mxu0 0.0
        %781 = vmatmul.mubr.f32.gmra.mrb[0].mxu0 %v688
        %v782 = vpop.f32.mrb[0].mxu0
        %v783 = vadd.f32 0.0, %v782
        %v784 = vpop.f32.mrb[0].mxu0
        %785 = vmatprep.mubr.f32.mxu0 0.0
        %786 = vmatmul.mubr.f32.gmra.mrb[0].mxu0 %v689
        %v787 = vpop.f32.mrb[0].mxu0
        %v788 = vadd.f32 0.0, %v787
        %v789 = vpop.f32.mrb[0].mxu0
        %790 = vmatprep.mubr.f32.mxu0 0.0
        %791 = vmatmul.mubr.f32.gmra.mrb[0].mxu0 %v690
        %v792 = vpop.f32.mrb[0].mxu0
        %v793 = vadd.f32 0.0, %v792
        %v794 = vpop.f32.mrb[0].mxu0
        %795 = vmatprep.mubr.f32.mxu0 0.0
        %796 = vmatmul.mubr.f32.gmra.mrb[0].mxu0 %v691
        %v797 = vpop.f32.mrb[0].mxu0
        %v798 = vadd.f32 0.0, %v797
        %v799 = vpop.f32.mrb[0].mxu0
        %800 = vmatprep.mubr.f32.mxu0 0.0
        %801 = vmatmul.mubr.f32.gmra.mrb[0].mxu0 %v692
        %v802 = vpop.f32.mrb[0].mxu0
        %v803 = vadd.f32 0.0, %v802
        %v804 = vpop.f32.mrb[0].mxu0
        %805 = vmatprep.mubr.f32.mxu0 0.0
        %806 = vmatmul.mubr.f32.gmra.mrb[0].mxu0 %v693
        %v807 = vpop.f32.mrb[0].mxu0
        %v808 = vadd.f32 0.0, %v807
        %v809 = vpop.f32.mrb[0].mxu0
        %810 = vmatprep.mubr.f32.mxu0 0.0
        %811 = vmatmul.mubr.f32.gmra.mrb[0].mxu0 %v694
        %v812 = vpop.f32.mrb[0].mxu0
        %v813 = vadd.f32 0.0, %v812
        %v814 = vpop.f32.mrb[0].mxu0
        %815 = vmatprep.mubr.f32.mxu0 0.0
        %816 = vmatmul.mubr.f32.gmra.mrb[0].mxu0 %v695
        %v817 = vpop.f32.mrb[0].mxu0
        %v818 = vadd.f32 0.0, %v817
        %v819 = vpop.f32.mrb[0].mxu0
        %820 = vmatprep.mubr.f32.mxu0 0.0
        %821 = vmatmul.mubr.f32.gmra.mrb[0].mxu0 %v696
        %v822 = vpop.f32.mrb[0].mxu0
        %v823 = vadd.f32 0.0, %v822
        %v824 = vpop.f32.mrb[0].mxu0
        %825 = vmatprep.mubr.f32.mxu0 0.0
        %826 = vmatmul.mubr.f32.gmra.mrb[0].mxu0 %v697
        %v827 = vpop.f32.mrb[0].mxu0
        %v828 = vadd.f32 0.0, %v827
        %v829 = vpop.f32.mrb[0].mxu0
        %830 = vmatprep.mubr.f32.mxu0 0.0
        %831 = vmatmul.mubr.f32.gmra.mrb[0].mxu0 %v698
        %v832 = vpop.f32.mrb[0].mxu0
        %v833 = vadd.f32 0.0, %v832
        %v834 = vpop.f32.mrb[0].mxu0
        %835 = vmatprep.mubr.f32.mxu0 0.0
        %836 = vmatmul.mubr.f32.gmra.mrb[0].mxu0 %v699
        %v837 = vpop.f32.mrb[0].mxu0
        %v838 = vadd.f32 0.0, %v837
        %v839 = vpop.f32.mrb[0].mxu0
        %840 = vmatprep.mubr.f32.mxu0 0.0
        %841 = vmatmul.mubr.f32.gmra.mrb[0].mxu0 %v700
        %v842 = vpop.f32.mrb[0].mxu0
        %v843 = vadd.f32 0.0, %v842
        %v844 = vpop.f32.mrb[0].mxu0
        %845 = vdwg.mxu0
        %v846 = vadd.f32 %v669, %v768
        %v847 = vadd.f32 %v670, %v773
        %v848 = vadd.f32 %v671, %v778
        %v849 = vadd.f32 %v672, %v783
        %v850 = vadd.f32 %v673, %v788
        %v851 = vadd.f32 %v674, %v793
        %v852 = vadd.f32 %v675, %v798
        %v853 = vadd.f32 %v676, %v803
        %v854 = vadd.f32 %v677, %v808
        %v855 = vadd.f32 %v678, %v813
        %v856 = vadd.f32 %v679, %v818
        %v857 = vadd.f32 %v680, %v823
        %v858 = vadd.f32 %v681, %v828
        %v859 = vadd.f32 %v682, %v833
        %v860 = vadd.f32 %v683, %v838
        %v861 = vadd.f32 %v684, %v843
        %862 = vst [vmem:[#allocation2] sm:$0xff] %v846
        %863 = vst [vmem:[#allocation2 + $0x8] sm:$0xff] %v847
        %864 = vst [vmem:[#allocation2 + $0x10] sm:$0xff] %v848
        %865 = vst [vmem:[#allocation2 + $0x18] sm:$0xff] %v849
        %866 = vst [vmem:[#allocation2 + $0x20] sm:$0xff] %v850
        %867 = vst [vmem:[#allocation2 + $0x28] sm:$0xff] %v851
        %868 = vst [vmem:[#allocation2 + $0x30] sm:$0xff] %v852
        %869 = vst [vmem:[#allocation2 + $0x38] sm:$0xff] %v853
        %870 = vst [vmem:[#allocation2 + $0x40] sm:$0xff] %v854
        %871 = vst [vmem:[#allocation2 + $0x48] sm:$0xff] %v855
        %872 = vst [vmem:[#allocation2 + $0x50] sm:$0xff] %v856
        %873 = vst [vmem:[#allocation2 + $0x58] sm:$0xff] %v857
        %874 = vst [vmem:[#allocation2 + $0x60] sm:$0xff] %v858
        %875 = vst [vmem:[#allocation2 + $0x68] sm:$0xff] %v859
        %876 = vst [vmem:[#allocation2 + $0x70] sm:$0xff] %v860
        %877 = vst [vmem:[#allocation2 + $0x78] sm:$0xff] %v861
        %p878 = scmp.eq.s32.totalorder %s21, 1
        // Predicated region
        $region159: #{graph_base_block_forward.6} parent=141 // pred_check
          %p879 = pneg %p878
        $region160: #{graph_base_block_forward.6} parent=141 // pred_check_branch
          %881 = sbr.rel (%p879) target = $region162
        $region161: #{graph_base_block_forward.6} parent=141 // pred_region
          %v882 = vld [vmem:[#allocation2] sm:$0xff]
          %v883 = vld [vmem:[#allocation2 + $0x8] sm:$0xff]
          %v884 = vld [vmem:[#allocation2 + $0x10] sm:$0xff]
          %v885 = vld [vmem:[#allocation2 + $0x18] sm:$0xff]
          %v886 = vld [vmem:[#allocation2 + $0x20] sm:$0xff]
          %v887 = vld [vmem:[#allocation2 + $0x28] sm:$0xff]
          %v888 = vld [vmem:[#allocation2 + $0x30] sm:$0xff]
          %v889 = vld [vmem:[#allocation2 + $0x38] sm:$0xff]
          %v890 = vld [vmem:[#allocation2 + $0x40] sm:$0xff]
          %v891 = vld [vmem:[#allocation2 + $0x48] sm:$0xff]
          %v892 = vld [vmem:[#allocation2 + $0x50] sm:$0xff]
          %v893 = vld [vmem:[#allocation2 + $0x58] sm:$0xff]
          %v894 = vld [vmem:[#allocation2 + $0x60] sm:$0xff]
          %v895 = vld [vmem:[#allocation2 + $0x68] sm:$0xff]
          %v896 = vld [vmem:[#allocation2 + $0x70] sm:$0xff]
          %v897 = vld [vmem:[#allocation2 + $0x78] sm:$0xff]
          %v898 = vld [vmem:[%s3] sm:$0x1]
          %v900 = vlaneseq
          %v901 = vshrl.u32 %v900, 7
          %v902 = vsub.s32 0, %v901
          %v903 = vrot.slane %v898, %v902
          %v905 = vmul.f32 %v882, %v903
          %v906 = vmul.f32 %v883, %v903
          %v907 = vmul.f32 %v884, %v903
          %v908 = vmul.f32 %v885, %v903
          %v909 = vmul.f32 %v886, %v903
          %v910 = vmul.f32 %v887, %v903
          %v911 = vmul.f32 %v888, %v903
          %v912 = vmul.f32 %v889, %v903
          %v913 = vmul.f32 %v890, %v903
          %v914 = vmul.f32 %v891, %v903
          %v915 = vmul.f32 %v892, %v903
          %v916 = vmul.f32 %v893, %v903
          %v917 = vmul.f32 %v894, %v903
          %v918 = vmul.f32 %v895, %v903
          %v919 = vmul.f32 %v896, %v903
          %v920 = vmul.f32 %v897, %v903
          %v921 = vld [vmem:[%s4] sm:$0x1]
          %v923 = vlaneseq
          %v924 = vshrl.u32 %v923, 7
          %v925 = vsub.s32 0, %v924
          %v926 = vrot.slane %v921, %v925
          %v928 = vadd.f32 %v905, %v926
          %v929 = vadd.f32 %v906, %v926
          %v930 = vadd.f32 %v907, %v926
          %v931 = vadd.f32 %v908, %v926
          %v932 = vadd.f32 %v909, %v926
          %v933 = vadd.f32 %v910, %v926
          %v934 = vadd.f32 %v911, %v926
          %v935 = vadd.f32 %v912, %v926
          %v936 = vadd.f32 %v913, %v926
          %v937 = vadd.f32 %v914, %v926
          %v938 = vadd.f32 %v915, %v926
          %v939 = vadd.f32 %v916, %v926
          %v940 = vadd.f32 %v917, %v926
          %v941 = vadd.f32 %v918, %v926
          %v942 = vadd.f32 %v919, %v926
          %v943 = vadd.f32 %v920, %v926
          %v944 = vmax.f32 %v928, 0.0
          %v945 = vmax.f32 %v929, 0.0
          %v946 = vmax.f32 %v930, 0.0
          %v947 = vmax.f32 %v931, 0.0
          %v948 = vmax.f32 %v932, 0.0
          %v949 = vmax.f32 %v933, 0.0
          %v950 = vmax.f32 %v934, 0.0
          %v951 = vmax.f32 %v935, 0.0
          %v952 = vmax.f32 %v936, 0.0
          %v953 = vmax.f32 %v937, 0.0
          %v954 = vmax.f32 %v938, 0.0
          %v955 = vmax.f32 %v939, 0.0
          %v956 = vmax.f32 %v940, 0.0
          %v957 = vmax.f32 %v941, 0.0
          %v958 = vmax.f32 %v942, 0.0
          %v959 = vmax.f32 %v943, 0.0
          %960 = vst [vmem:[%s613] sm:$0xff] %v944
          %961 = vst [vmem:[%s613 + $0x8] sm:$0xff] %v945
          %962 = vst [vmem:[%s613 + $0x10] sm:$0xff] %v946
          %963 = vst [vmem:[%s613 + $0x18] sm:$0xff] %v947
          %964 = vst [vmem:[%s613 + $0x20] sm:$0xff] %v948
          %965 = vst [vmem:[%s613 + $0x28] sm:$0xff] %v949
          %966 = vst [vmem:[%s613 + $0x30] sm:$0xff] %v950
          %967 = vst [vmem:[%s613 + $0x38] sm:$0xff] %v951
          %968 = vst [vmem:[%s613 + $0x40] sm:$0xff] %v952
          %969 = vst [vmem:[%s613 + $0x48] sm:$0xff] %v953
          %970 = vst [vmem:[%s613 + $0x50] sm:$0xff] %v954
          %971 = vst [vmem:[%s613 + $0x58] sm:$0xff] %v955
          %972 = vst [vmem:[%s613 + $0x60] sm:$0xff] %v956
          %973 = vst [vmem:[%s613 + $0x68] sm:$0xff] %v957
          %974 = vst [vmem:[%s613 + $0x70] sm:$0xff] %v958
          %975 = vst [vmem:[%s613 + $0x78] sm:$0xff] %v959
        $region162: #{graph_base_block_forward.6} parent=141 // pred_fallthru
          _
        %s976 = smul.u32 16, %s20
        %p977 = scmp.lt.s32.totalorder %s976, 31
        %s978 = scalar_select %p977, %s976, 31
        %s979 = smul.addr %s978, 8
        %s980 = scalar_lea.vmem %s5, %s979
        // Predicated region
        $region163: #{graph_base_block_forward.6} parent=141 // pred_check
          %p981 = pneg %p163
        $region164: #{graph_base_block_forward.6} parent=141 // pred_check_branch
          %983 = sbr.rel (%p981) target = $region166
        $region165: #{graph_base_block_forward.6} parent=141 // pred_region
          %s984 = smul.u32 16, %s20
        $region166: #{graph_base_block_forward.6} parent=141 // pred_fallthru
          _
      $region142: #{graph_base_block_forward.6} parent=5 // pred_fallthru
        _
      %p985 = scmp.le.s32.totalorder 2, %s11
      // Predicated region
      $region167: #{graph_base_block_forward.6} parent=5 // pred_check
        %p986 = pneg %p985
      $region168: #{graph_base_block_forward.6} parent=5 // pred_check_branch
        %988 = sbr.rel (%p986) target = $region170
      $region169: #{graph_base_block_forward.6} parent=5 // pred_region
        %s989 = ssub.s32 %s11, 2
        // Predicated region
        $region171: #{graph_base_block_forward.6} parent=169 // pred_check
          %p990 = pneg %p169
        $region172: #{graph_base_block_forward.6} parent=169 // pred_check_branch
          %992 = sbr.rel (%p990) target = $region174
        $region173: #{graph_base_block_forward.6} parent=169 // pred_region
          %s993 = smul.u32 16, %s22
          %p994 = scmp.lt.s32.totalorder %s993, 31
          %s995 = scalar_select %p994, %s993, 31
          %s996 = smul.addr %s995, 8
          %s997 = scalar_lea.vmem %s5, %s996
        $region174: #{graph_base_block_forward.6} parent=169 // pred_fallthru
          _
      $region170: #{graph_base_block_forward.6} parent=5 // pred_fallthru
        _
    $region6: #{graph_base_block_forward.6} parent=1 // loop_footer
      %s15 = sadd.s32 1, %s11
    $region7: #{graph_base_block_forward.6} parent=1 // loop_footer_branch
      %10 = sbr.rel target = $region3
    $region8: #{graph_base_block_forward.6} parent=1 // loop_exit
      _

</llo_original>
